<compile_context>
chip_gen: v6e
topology: v6e:2x2x1
jax: 0.10.0
libtpu: 0.0.40
codegen_flags: <defaults>
</compile_context>

<pallas_src>
import jax
import jax.numpy as jnp
from jax.experimental import pallas as pl
from jax.experimental.pallas import tpu as pltpu

LANE = 128  # TPU lane width; projector output padded to this for lane-dense stores.


def deepar_kernel(x_ref, wih_ref, whh_ref, b_ref, w1_ref, b1_ref, w2_ref, b2_ref,
                  out_ref, h_ref, c_ref):
    L, B, C = x_ref.shape
    H = whh_ref.shape[0]
    n_pad = w2_ref.shape[1]          # lane-padded number of distribution args

    # ---- _TSScaler (normalize=True), fused into the pre-pass ---------------
    x = x_ref[...].astype(jnp.float32)                            # (L, B, C)
    mu = jnp.mean(x, axis=-1, keepdims=True)
    var = jnp.mean((x - mu) ** 2, axis=-1, keepdims=True)         # unbiased=False
    factors = jnp.sqrt(jnp.sqrt(var)) + 1e-10                     # sqrt(std) + eps
    xs = (x - mu) / factors                                       # (L, B, C)

    wih = wih_ref[...]   # (C, 4H)
    whh = whh_ref[...]   # (H, 4H)
    b = b_ref[...]       # (1, 4H) = b_ih + b_hh

    # ---- Hoisted input projection: one matmul feeds all 2L serial steps ----
    gx = (jnp.dot(xs.reshape(L * B, C), wih, preferred_element_type=jnp.float32)
          + b).reshape(L, B, 4 * H)                               # (L, B, 4H)

    def lstm_step(gx_t, h, c):
        gates = gx_t + jnp.dot(h, whh, preferred_element_type=jnp.float32)
        i = jax.nn.sigmoid(gates[:, 0 * H:1 * H])
        f = jax.nn.sigmoid(gates[:, 1 * H:2 * H])
        g = jnp.tanh(gates[:, 2 * H:3 * H])
        o = jax.nn.sigmoid(gates[:, 3 * H:4 * H])
        c_new = f * c + i * g
        h_new = o * jnp.tanh(c_new)
        return h_new, c_new

    h = jnp.zeros((B, H), jnp.float32)
    c = jnp.zeros((B, H), jnp.float32)

    # ---- encode(): LSTM from zero state (fully unrolled, L is static) ------
    for t in range(L):
        h, c = lstm_step(gx[t], h, c)

    # ---- _decode_whole_seq(): LSTM seeded with the encoder state -----------
    hs = []
    for t in range(L):
        h, c = lstm_step(gx[t], h, c)
        hs.append(h)
    h_ref[...] = h
    c_ref[...] = c

    # ---- projector applied once to the whole decoded hidden sequence -------
    hseq = jnp.stack(hs, axis=0).reshape(L * B, H)                # (L*B, H)
    p = jnp.dot(hseq, w1_ref[...], preferred_element_type=jnp.float32) + b1_ref[...]
    out = jnp.dot(p, w2_ref[...], preferred_element_type=jnp.float32) + b2_ref[...]
    out_ref[...] = out.reshape(L, B, n_pad)                       # lane-dense store


def init_params(key, input_size, hidden_size, n_dist_args=2):
    """Deterministic synthetic parameters (PyTorch-default-style uniform init)."""
    ks = jax.random.split(key, 8)
    bound = 1.0 / float(jnp.sqrt(hidden_size))
    u = lambda k, shape: jax.random.uniform(k, shape, jnp.float32, -bound, bound)
    w_ih = u(ks[0], (4 * hidden_size, input_size))   # torch weight_ih_l0
    w_hh = u(ks[1], (4 * hidden_size, hidden_size))  # torch weight_hh_l0
    b_ih = u(ks[2], (4 * hidden_size,))
    b_hh = u(ks[3], (4 * hidden_size,))
    w1 = u(ks[4], (hidden_size, hidden_size))        # projector Linear 1
    b1 = u(ks[5], (hidden_size,))
    w2 = u(ks[6], (n_dist_args, hidden_size))        # projector Linear 2
    b2 = u(ks[7], (n_dist_args,))
    return dict(
        wih_t=jnp.asarray(w_ih.T),            # (C, 4H)
        whh_t=jnp.asarray(w_hh.T),            # (H, 4H)
        b=(b_ih + b_hh)[None, :],             # (1, 4H)
        w1_t=jnp.asarray(w1.T),               # (H, H)
        b1=b1[None, :],                       # (1, H)
        w2_t=jnp.asarray(w2.T),               # (H, n_args)
        b2=b2[None, :],                       # (1, n_args)
    )


def deepar_forward(x, p):
    """x: (B, L, C) float32  ->  (output (B, L, n_args), (h_n, c_n))."""
    B, L, C = x.shape
    H = p["whh_t"].shape[0]
    n_args = p["w2_t"].shape[1]

    # Pad batch to a multiple of 8 sublanes; pad projector output to 128 lanes
    # so the kernel's final store is unmasked / lane-dense.
    B_pad = ((B + 7) // 8) * 8
    n_pad = ((n_args + LANE - 1) // LANE) * LANE

    x_tm = jnp.transpose(x, (1, 0, 2))                        # time-major (L, B, C)
    if B_pad != B:
        x_tm = jnp.pad(x_tm, ((0, 0), (0, B_pad - B), (0, 0)))
    w2_p = jnp.pad(p["w2_t"], ((0, 0), (0, n_pad - n_args)))  # (H, 128)
    b2_p = jnp.pad(p["b2"], ((0, 0), (0, n_pad - n_args)))    # (1, 128)

    vmem = pl.BlockSpec(memory_space=pltpu.MemorySpace.VMEM)
    out_tm, h_n, c_n = pl.pallas_call(
        deepar_kernel,
        out_shape=(
            jax.ShapeDtypeStruct((L, B_pad, n_pad), jnp.float32),
            jax.ShapeDtypeStruct((B_pad, H), jnp.float32),
            jax.ShapeDtypeStruct((B_pad, H), jnp.float32),
        ),
        in_specs=[vmem] * 8,
        out_specs=(vmem, vmem, vmem),
    )(x_tm, p["wih_t"], p["whh_t"], p["b"], p["w1_t"], p["b1"], w2_p, b2_p)

    output = jnp.transpose(out_tm[:, :B, :n_args], (1, 0, 2))  # (B, L, n_args)
    hidden_state = (h_n[None, :B], c_n[None, :B])              # (num_layers=1, B, H)
    return output, hidden_state


if __name__ == "__main__":
    # Small shapes consistent with the module: batch(nseries)=2, length=8,
    # input_size=4, hidden_size=32, rnn_layers=1, distribution='normal' (2 args).
    B, L, C, H = 2, 8, 4, 32
    key = jax.random.PRNGKey(0)
    kx, kp = jax.random.split(key)
    x = jax.random.normal(kx, (B, L, C), dtype=jnp.float32)
    params = init_params(kp, input_size=C, hidden_size=H, n_dist_args=2)

    out, (h_n, c_n) = jax.jit(deepar_forward)(x, params)
    jax.block_until_ready((out, h_n, c_n))
    assert out.shape == (B, L, 2) and h_n.shape == (1, B, H) and c_n.shape == (1, B, H)
    assert bool(jnp.all(jnp.isfinite(out)))
    print("KERNEL_OK")
</pallas_src>

<mosaic_0001>
module attributes {stable_mosaic.version = 11 : i64} {
  func.func @deepar_kernel(%arg0: memref<8x8x4xf32, #tpu.memory_space<vmem>>, %arg1: memref<4x128xf32, #tpu.memory_space<vmem>>, %arg2: memref<32x128xf32, #tpu.memory_space<vmem>>, %arg3: memref<1x128xf32, #tpu.memory_space<vmem>>, %arg4: memref<32x32xf32, #tpu.memory_space<vmem>>, %arg5: memref<1x32xf32, #tpu.memory_space<vmem>>, %arg6: memref<32x128xf32, #tpu.memory_space<vmem>>, %arg7: memref<1x128xf32, #tpu.memory_space<vmem>>, %arg8: memref<8x8x128xf32, #tpu.memory_space<vmem>>, %arg9: memref<8x32xf32, #tpu.memory_space<vmem>>, %arg10: memref<8x32xf32, #tpu.memory_space<vmem>>) attributes {dimension_semantics = [], scalar_prefetch = 0 : i64, scratch_operands = 0 : i64, tpu.core_type = #tpu.core_type<tc>} {
    %c0 = arith.constant 0 : index
    %c0_0 = arith.constant 0 : index
    %c0_1 = arith.constant 0 : index
    %0 = vector.load %arg0[%c0, %c0_0, %c0_1] : memref<8x8x4xf32, #tpu.memory_space<vmem>>, vector<8x8x4xf32>
    %cst = arith.constant dense<0.000000e+00> : vector<8x8xf32>
    %1 = vector.multi_reduction <add>, %0, %cst [2] : vector<8x8x4xf32> to vector<8x8xf32>
    %2 = vector.shape_cast %1 : vector<8x8xf32> to vector<8x8x1xf32>
    %cst_2 = arith.constant 4.000000e+00 : f32
    %3 = vector.broadcast %cst_2 : f32 to vector<8x8x1xf32>
    %4 = arith.divf %2, %3 : vector<8x8x1xf32>
    %5 = vector.broadcast %4 : vector<8x8x1xf32> to vector<8x8x4xf32>
    %6 = arith.subf %0, %5 : vector<8x8x4xf32>
    %7 = arith.mulf %6, %6 : vector<8x8x4xf32>
    %cst_3 = arith.constant dense<0.000000e+00> : vector<8x8xf32>
    %8 = vector.multi_reduction <add>, %7, %cst_3 [2] : vector<8x8x4xf32> to vector<8x8xf32>
    %9 = vector.shape_cast %8 : vector<8x8xf32> to vector<8x8x1xf32>
    %cst_4 = arith.constant 4.000000e+00 : f32
    %10 = vector.broadcast %cst_4 : f32 to vector<8x8x1xf32>
    %11 = arith.divf %9, %10 : vector<8x8x1xf32>
    %12 = math.sqrt %11 : vector<8x8x1xf32>
    %13 = math.sqrt %12 : vector<8x8x1xf32>
    %cst_5 = arith.constant 1.000000e-10 : f32
    %14 = vector.broadcast %cst_5 : f32 to vector<8x8x1xf32>
    %15 = arith.addf %13, %14 : vector<8x8x1xf32>
    %16 = vector.broadcast %4 : vector<8x8x1xf32> to vector<8x8x4xf32>
    %17 = arith.subf %0, %16 : vector<8x8x4xf32>
    %18 = vector.broadcast %15 : vector<8x8x1xf32> to vector<8x8x4xf32>
    %19 = arith.divf %17, %18 : vector<8x8x4xf32>
    %c0_6 = arith.constant 0 : index
    %c0_7 = arith.constant 0 : index
    %20 = vector.load %arg1[%c0_6, %c0_7] : memref<4x128xf32, #tpu.memory_space<vmem>>, vector<4x128xf32>
    %c0_8 = arith.constant 0 : index
    %c0_9 = arith.constant 0 : index
    %21 = vector.load %arg2[%c0_8, %c0_9] : memref<32x128xf32, #tpu.memory_space<vmem>>, vector<32x128xf32>
    %c0_10 = arith.constant 0 : index
    %c0_11 = arith.constant 0 : index
    %22 = vector.load %arg3[%c0_10, %c0_11] : memref<1x128xf32, #tpu.memory_space<vmem>>, vector<1x128xf32>
    %23 = vector.shape_cast %19 : vector<8x8x4xf32> to vector<64x4xf32>
    %cst_12 = arith.constant dense<0.000000e+00> : vector<64x128xf32>
    %24 = tpu.matmul %23, %20, %cst_12 {dimension_numbers = #tpu.dot_dimension_numbers<[1], [0], [0], [1], [0, 0, 1, 1], [], []>} : vector<64x4xf32>, vector<4x128xf32>, vector<64x128xf32> -> vector<64x128xf32>
    %25 = vector.broadcast %22 : vector<1x128xf32> to vector<64x128xf32>
    %26 = arith.addf %24, %25 : vector<64x128xf32>
    %27 = vector.shape_cast %26 : vector<64x128xf32> to vector<8x8x128xf32>
    %cst_13 = arith.constant 0.000000e+00 : f32
    %28 = vector.broadcast %cst_13 : f32 to vector<8x32xf32>
    %cst_14 = arith.constant 0.000000e+00 : f32
    %29 = vector.broadcast %cst_14 : f32 to vector<8x32xf32>
    %30 = vector.extract_strided_slice %27 {offsets = [0, 0, 0], sizes = [1, 8, 128], strides = [1, 1, 1]} : vector<8x8x128xf32> to vector<1x8x128xf32>
    %31 = vector.shape_cast %30 : vector<1x8x128xf32> to vector<8x128xf32>
    %cst_15 = arith.constant dense<0.000000e+00> : vector<8x128xf32>
    %32 = tpu.matmul %28, %21, %cst_15 {dimension_numbers = #tpu.dot_dimension_numbers<[1], [0], [0], [1], [0, 0, 1, 1], [], []>} : vector<8x32xf32>, vector<32x128xf32>, vector<8x128xf32> -> vector<8x128xf32>
    %33 = arith.addf %31, %32 : vector<8x128xf32>
    %34 = vector.extract_strided_slice %33 {offsets = [0, 0], sizes = [8, 32], strides = [1, 1]} : vector<8x128xf32> to vector<8x32xf32>
    %35 = arith.negf %34 : vector<8x32xf32>
    %36 = math.exp %35 : vector<8x32xf32>
    %cst_16 = arith.constant 1.000000e+00 : f32
    %37 = vector.broadcast %cst_16 : f32 to vector<8x32xf32>
    %38 = arith.addf %37, %36 : vector<8x32xf32>
    %39 = arith.divf %37, %38 : vector<8x32xf32>
    %40 = vector.extract_strided_slice %33 {offsets = [0, 32], sizes = [8, 32], strides = [1, 1]} : vector<8x128xf32> to vector<8x32xf32>
    %41 = arith.negf %40 : vector<8x32xf32>
    %42 = math.exp %41 : vector<8x32xf32>
    %cst_17 = arith.constant 1.000000e+00 : f32
    %43 = vector.broadcast %cst_17 : f32 to vector<8x32xf32>
    %44 = arith.addf %43, %42 : vector<8x32xf32>
    %45 = arith.divf %43, %44 : vector<8x32xf32>
    %46 = vector.extract_strided_slice %33 {offsets = [0, 64], sizes = [8, 32], strides = [1, 1]} : vector<8x128xf32> to vector<8x32xf32>
    %47 = math.tanh %46 : vector<8x32xf32>
    %48 = vector.extract_strided_slice %33 {offsets = [0, 96], sizes = [8, 32], strides = [1, 1]} : vector<8x128xf32> to vector<8x32xf32>
    %49 = arith.negf %48 : vector<8x32xf32>
    %50 = math.exp %49 : vector<8x32xf32>
    %cst_18 = arith.constant 1.000000e+00 : f32
    %51 = vector.broadcast %cst_18 : f32 to vector<8x32xf32>
    %52 = arith.addf %51, %50 : vector<8x32xf32>
    %53 = arith.divf %51, %52 : vector<8x32xf32>
    %54 = arith.mulf %45, %29 : vector<8x32xf32>
    %55 = arith.mulf %39, %47 : vector<8x32xf32>
    %56 = arith.addf %54, %55 : vector<8x32xf32>
    %57 = math.tanh %56 : vector<8x32xf32>
    %58 = arith.mulf %53, %57 : vector<8x32xf32>
    %59 = vector.extract_strided_slice %27 {offsets = [1, 0, 0], sizes = [1, 8, 128], strides = [1, 1, 1]} : vector<8x8x128xf32> to vector<1x8x128xf32>
    %60 = vector.shape_cast %59 : vector<1x8x128xf32> to vector<8x128xf32>
    %cst_19 = arith.constant dense<0.000000e+00> : vector<8x128xf32>
    %61 = tpu.matmul %58, %21, %cst_19 {dimension_numbers = #tpu.dot_dimension_numbers<[1], [0], [0], [1], [0, 0, 1, 1], [], []>} : vector<8x32xf32>, vector<32x128xf32>, vector<8x128xf32> -> vector<8x128xf32>
    %62 = arith.addf %60, %61 : vector<8x128xf32>
    %63 = vector.extract_strided_slice %62 {offsets = [0, 0], sizes = [8, 32], strides = [1, 1]} : vector<8x128xf32> to vector<8x32xf32>
    %64 = arith.negf %63 : vector<8x32xf32>
    %65 = math.exp %64 : vector<8x32xf32>
    %cst_20 = arith.constant 1.000000e+00 : f32
    %66 = vector.broadcast %cst_20 : f32 to vector<8x32xf32>
    %67 = arith.addf %66, %65 : vector<8x32xf32>
    %68 = arith.divf %66, %67 : vector<8x32xf32>
    %69 = vector.extract_strided_slice %62 {offsets = [0, 32], sizes = [8, 32], strides = [1, 1]} : vector<8x128xf32> to vector<8x32xf32>
    %70 = arith.negf %69 : vector<8x32xf32>
    %71 = math.exp %70 : vector<8x32xf32>
    %cst_21 = arith.constant 1.000000e+00 : f32
    %72 = vector.broadcast %cst_21 : f32 to vector<8x32xf32>
    %73 = arith.addf %72, %71 : vector<8x32xf32>
    %74 = arith.divf %72, %73 : vector<8x32xf32>
    %75 = vector.extract_strided_slice %62 {offsets = [0, 64], sizes = [8, 32], strides = [1, 1]} : vector<8x128xf32> to vector<8x32xf32>
    %76 = math.tanh %75 : vector<8x32xf32>
    %77 = vector.extract_strided_slice %62 {offsets = [0, 96], sizes = [8, 32], strides = [1, 1]} : vector<8x128xf32> to vector<8x32xf32>
    %78 = arith.negf %77 : vector<8x32xf32>
    %79 = math.exp %78 : vector<8x32xf32>
    %cst_22 = arith.constant 1.000000e+00 : f32
    %80 = vector.broadcast %cst_22 : f32 to vector<8x32xf32>
    %81 = arith.addf %80, %79 : vector<8x32xf32>
    %82 = arith.divf %80, %81 : vector<8x32xf32>
    %83 = arith.mulf %74, %56 : vector<8x32xf32>
    %84 = arith.mulf %68, %76 : vector<8x32xf32>
    %85 = arith.addf %83, %84 : vector<8x32xf32>
    %86 = math.tanh %85 : vector<8x32xf32>
    %87 = arith.mulf %82, %86 : vector<8x32xf32>
    %88 = vector.extract_strided_slice %27 {offsets = [2, 0, 0], sizes = [1, 8, 128], strides = [1, 1, 1]} : vector<8x8x128xf32> to vector<1x8x128xf32>
    %89 = vector.shape_cast %88 : vector<1x8x128xf32> to vector<8x128xf32>
    %cst_23 = arith.constant dense<0.000000e+00> : vector<8x128xf32>
    %90 = tpu.matmul %87, %21, %cst_23 {dimension_numbers = #tpu.dot_dimension_numbers<[1], [0], [0], [1], [0, 0, 1, 1], [], []>} : vector<8x32xf32>, vector<32x128xf32>, vector<8x128xf32> -> vector<8x128xf32>
    %91 = arith.addf %89, %90 : vector<8x128xf32>
    %92 = vector.extract_strided_slice %91 {offsets = [0, 0], sizes = [8, 32], strides = [1, 1]} : vector<8x128xf32> to vector<8x32xf32>
    %93 = arith.negf %92 : vector<8x32xf32>
    %94 = math.exp %93 : vector<8x32xf32>
    %cst_24 = arith.constant 1.000000e+00 : f32
    %95 = vector.broadcast %cst_24 : f32 to vector<8x32xf32>
    %96 = arith.addf %95, %94 : vector<8x32xf32>
    %97 = arith.divf %95, %96 : vector<8x32xf32>
    %98 = vector.extract_strided_slice %91 {offsets = [0, 32], sizes = [8, 32], strides = [1, 1]} : vector<8x128xf32> to vector<8x32xf32>
    %99 = arith.negf %98 : vector<8x32xf32>
    %100 = math.exp %99 : vector<8x32xf32>
    %cst_25 = arith.constant 1.000000e+00 : f32
    %101 = vector.broadcast %cst_25 : f32 to vector<8x32xf32>
    %102 = arith.addf %101, %100 : vector<8x32xf32>
    %103 = arith.divf %101, %102 : vector<8x32xf32>
    %104 = vector.extract_strided_slice %91 {offsets = [0, 64], sizes = [8, 32], strides = [1, 1]} : vector<8x128xf32> to vector<8x32xf32>
    %105 = math.tanh %104 : vector<8x32xf32>
    %106 = vector.extract_strided_slice %91 {offsets = [0, 96], sizes = [8, 32], strides = [1, 1]} : vector<8x128xf32> to vector<8x32xf32>
    %107 = arith.negf %106 : vector<8x32xf32>
    %108 = math.exp %107 : vector<8x32xf32>
    %cst_26 = arith.constant 1.000000e+00 : f32
    %109 = vector.broadcast %cst_26 : f32 to vector<8x32xf32>
    %110 = arith.addf %109, %108 : vector<8x32xf32>
    %111 = arith.divf %109, %110 : vector<8x32xf32>
    %112 = arith.mulf %103, %85 : vector<8x32xf32>
    %113 = arith.mulf %97, %105 : vector<8x32xf32>
    %114 = arith.addf %112, %113 : vector<8x32xf32>
    %115 = math.tanh %114 : vector<8x32xf32>
    %116 = arith.mulf %111, %115 : vector<8x32xf32>
    %117 = vector.extract_strided_slice %27 {offsets = [3, 0, 0], sizes = [1, 8, 128], strides = [1, 1, 1]} : vector<8x8x128xf32> to vector<1x8x128xf32>
    %118 = vector.shape_cast %117 : vector<1x8x128xf32> to vector<8x128xf32>
    %cst_27 = arith.constant dense<0.000000e+00> : vector<8x128xf32>
    %119 = tpu.matmul %116, %21, %cst_27 {dimension_numbers = #tpu.dot_dimension_numbers<[1], [0], [0], [1], [0, 0, 1, 1], [], []>} : vector<8x32xf32>, vector<32x128xf32>, vector<8x128xf32> -> vector<8x128xf32>
    %120 = arith.addf %118, %119 : vector<8x128xf32>
    %121 = vector.extract_strided_slice %120 {offsets = [0, 0], sizes = [8, 32], strides = [1, 1]} : vector<8x128xf32> to vector<8x32xf32>
    %122 = arith.negf %121 : vector<8x32xf32>
    %123 = math.exp %122 : vector<8x32xf32>
    %cst_28 = arith.constant 1.000000e+00 : f32
    %124 = vector.broadcast %cst_28 : f32 to vector<8x32xf32>
    %125 = arith.addf %124, %123 : vector<8x32xf32>
    %126 = arith.divf %124, %125 : vector<8x32xf32>
    %127 = vector.extract_strided_slice %120 {offsets = [0, 32], sizes = [8, 32], strides = [1, 1]} : vector<8x128xf32> to vector<8x32xf32>
    %128 = arith.negf %127 : vector<8x32xf32>
    %129 = math.exp %128 : vector<8x32xf32>
    %cst_29 = arith.constant 1.000000e+00 : f32
    %130 = vector.broadcast %cst_29 : f32 to vector<8x32xf32>
    %131 = arith.addf %130, %129 : vector<8x32xf32>
    %132 = arith.divf %130, %131 : vector<8x32xf32>
    %133 = vector.extract_strided_slice %120 {offsets = [0, 64], sizes = [8, 32], strides = [1, 1]} : vector<8x128xf32> to vector<8x32xf32>
    %134 = math.tanh %133 : vector<8x32xf32>
    %135 = vector.extract_strided_slice %120 {offsets = [0, 96], sizes = [8, 32], strides = [1, 1]} : vector<8x128xf32> to vector<8x32xf32>
    %136 = arith.negf %135 : vector<8x32xf32>
    %137 = math.exp %136 : vector<8x32xf32>
    %cst_30 = arith.constant 1.000000e+00 : f32
    %138 = vector.broadcast %cst_30 : f32 to vector<8x32xf32>
    %139 = arith.addf %138, %137 : vector<8x32xf32>
    %140 = arith.divf %138, %139 : vector<8x32xf32>
    %141 = arith.mulf %132, %114 : vector<8x32xf32>
    %142 = arith.mulf %126, %134 : vector<8x32xf32>
    %143 = arith.addf %141, %142 : vector<8x32xf32>
    %144 = math.tanh %143 : vector<8x32xf32>
    %145 = arith.mulf %140, %144 : vector<8x32xf32>
    %146 = vector.extract_strided_slice %27 {offsets = [4, 0, 0], sizes = [1, 8, 128], strides = [1, 1, 1]} : vector<8x8x128xf32> to vector<1x8x128xf32>
    %147 = vector.shape_cast %146 : vector<1x8x128xf32> to vector<8x128xf32>
    %cst_31 = arith.constant dense<0.000000e+00> : vector<8x128xf32>
    %148 = tpu.matmul %145, %21, %cst_31 {dimension_numbers = #tpu.dot_dimension_numbers<[1], [0], [0], [1], [0, 0, 1, 1], [], []>} : vector<8x32xf32>, vector<32x128xf32>, vector<8x128xf32> -> vector<8x128xf32>
    %149 = arith.addf %147, %148 : vector<8x128xf32>
    %150 = vector.extract_strided_slice %149 {offsets = [0, 0], sizes = [8, 32], strides = [1, 1]} : vector<8x128xf32> to vector<8x32xf32>
    %151 = arith.negf %150 : vector<8x32xf32>
    %152 = math.exp %151 : vector<8x32xf32>
    %cst_32 = arith.constant 1.000000e+00 : f32
    %153 = vector.broadcast %cst_32 : f32 to vector<8x32xf32>
    %154 = arith.addf %153, %152 : vector<8x32xf32>
    %155 = arith.divf %153, %154 : vector<8x32xf32>
    %156 = vector.extract_strided_slice %149 {offsets = [0, 32], sizes = [8, 32], strides = [1, 1]} : vector<8x128xf32> to vector<8x32xf32>
    %157 = arith.negf %156 : vector<8x32xf32>
    %158 = math.exp %157 : vector<8x32xf32>
    %cst_33 = arith.constant 1.000000e+00 : f32
    %159 = vector.broadcast %cst_33 : f32 to vector<8x32xf32>
    %160 = arith.addf %159, %158 : vector<8x32xf32>
    %161 = arith.divf %159, %160 : vector<8x32xf32>
    %162 = vector.extract_strided_slice %149 {offsets = [0, 64], sizes = [8, 32], strides = [1, 1]} : vector<8x128xf32> to vector<8x32xf32>
    %163 = math.tanh %162 : vector<8x32xf32>
    %164 = vector.extract_strided_slice %149 {offsets = [0, 96], sizes = [8, 32], strides = [1, 1]} : vector<8x128xf32> to vector<8x32xf32>
    %165 = arith.negf %164 : vector<8x32xf32>
    %166 = math.exp %165 : vector<8x32xf32>
    %cst_34 = arith.constant 1.000000e+00 : f32
    %167 = vector.broadcast %cst_34 : f32 to vector<8x32xf32>
    %168 = arith.addf %167, %166 : vector<8x32xf32>
    %169 = arith.divf %167, %168 : vector<8x32xf32>
    %170 = arith.mulf %161, %143 : vector<8x32xf32>
    %171 = arith.mulf %155, %163 : vector<8x32xf32>
    %172 = arith.addf %170, %171 : vector<8x32xf32>
    %173 = math.tanh %172 : vector<8x32xf32>
    %174 = arith.mulf %169, %173 : vector<8x32xf32>
    %175 = vector.extract_strided_slice %27 {offsets = [5, 0, 0], sizes = [1, 8, 128], strides = [1, 1, 1]} : vector<8x8x128xf32> to vector<1x8x128xf32>
    %176 = vector.shape_cast %175 : vector<1x8x128xf32> to vector<8x128xf32>
    %cst_35 = arith.constant dense<0.000000e+00> : vector<8x128xf32>
    %177 = tpu.matmul %174, %21, %cst_35 {dimension_numbers = #tpu.dot_dimension_numbers<[1], [0], [0], [1], [0, 0, 1, 1], [], []>} : vector<8x32xf32>, vector<32x128xf32>, vector<8x128xf32> -> vector<8x128xf32>
    %178 = arith.addf %176, %177 : vector<8x128xf32>
    %179 = vector.extract_strided_slice %178 {offsets = [0, 0], sizes = [8, 32], strides = [1, 1]} : vector<8x128xf32> to vector<8x32xf32>
    %180 = arith.negf %179 : vector<8x32xf32>
    %181 = math.exp %180 : vector<8x32xf32>
    %cst_36 = arith.constant 1.000000e+00 : f32
    %182 = vector.broadcast %cst_36 : f32 to vector<8x32xf32>
    %183 = arith.addf %182, %181 : vector<8x32xf32>
    %184 = arith.divf %182, %183 : vector<8x32xf32>
    %185 = vector.extract_strided_slice %178 {offsets = [0, 32], sizes = [8, 32], strides = [1, 1]} : vector<8x128xf32> to vector<8x32xf32>
    %186 = arith.negf %185 : vector<8x32xf32>
    %187 = math.exp %186 : vector<8x32xf32>
    %cst_37 = arith.constant 1.000000e+00 : f32
    %188 = vector.broadcast %cst_37 : f32 to vector<8x32xf32>
    %189 = arith.addf %188, %187 : vector<8x32xf32>
    %190 = arith.divf %188, %189 : vector<8x32xf32>
    %191 = vector.extract_strided_slice %178 {offsets = [0, 64], sizes = [8, 32], strides = [1, 1]} : vector<8x128xf32> to vector<8x32xf32>
    %192 = math.tanh %191 : vector<8x32xf32>
    %193 = vector.extract_strided_slice %178 {offsets = [0, 96], sizes = [8, 32], strides = [1, 1]} : vector<8x128xf32> to vector<8x32xf32>
    %194 = arith.negf %193 : vector<8x32xf32>
    %195 = math.exp %194 : vector<8x32xf32>
    %cst_38 = arith.constant 1.000000e+00 : f32
    %196 = vector.broadcast %cst_38 : f32 to vector<8x32xf32>
    %197 = arith.addf %196, %195 : vector<8x32xf32>
    %198 = arith.divf %196, %197 : vector<8x32xf32>
    %199 = arith.mulf %190, %172 : vector<8x32xf32>
    %200 = arith.mulf %184, %192 : vector<8x32xf32>
    %201 = arith.addf %199, %200 : vector<8x32xf32>
    %202 = math.tanh %201 : vector<8x32xf32>
    %203 = arith.mulf %198, %202 : vector<8x32xf32>
    %204 = vector.extract_strided_slice %27 {offsets = [6, 0, 0], sizes = [1, 8, 128], strides = [1, 1, 1]} : vector<8x8x128xf32> to vector<1x8x128xf32>
    %205 = vector.shape_cast %204 : vector<1x8x128xf32> to vector<8x128xf32>
    %cst_39 = arith.constant dense<0.000000e+00> : vector<8x128xf32>
    %206 = tpu.matmul %203, %21, %cst_39 {dimension_numbers = #tpu.dot_dimension_numbers<[1], [0], [0], [1], [0, 0, 1, 1], [], []>} : vector<8x32xf32>, vector<32x128xf32>, vector<8x128xf32> -> vector<8x128xf32>
    %207 = arith.addf %205, %206 : vector<8x128xf32>
    %208 = vector.extract_strided_slice %207 {offsets = [0, 0], sizes = [8, 32], strides = [1, 1]} : vector<8x128xf32> to vector<8x32xf32>
    %209 = arith.negf %208 : vector<8x32xf32>
    %210 = math.exp %209 : vector<8x32xf32>
    %cst_40 = arith.constant 1.000000e+00 : f32
    %211 = vector.broadcast %cst_40 : f32 to vector<8x32xf32>
    %212 = arith.addf %211, %210 : vector<8x32xf32>
    %213 = arith.divf %211, %212 : vector<8x32xf32>
    %214 = vector.extract_strided_slice %207 {offsets = [0, 32], sizes = [8, 32], strides = [1, 1]} : vector<8x128xf32> to vector<8x32xf32>
    %215 = arith.negf %214 : vector<8x32xf32>
    %216 = math.exp %215 : vector<8x32xf32>
    %cst_41 = arith.constant 1.000000e+00 : f32
    %217 = vector.broadcast %cst_41 : f32 to vector<8x32xf32>
    %218 = arith.addf %217, %216 : vector<8x32xf32>
    %219 = arith.divf %217, %218 : vector<8x32xf32>
    %220 = vector.extract_strided_slice %207 {offsets = [0, 64], sizes = [8, 32], strides = [1, 1]} : vector<8x128xf32> to vector<8x32xf32>
    %221 = math.tanh %220 : vector<8x32xf32>
    %222 = vector.extract_strided_slice %207 {offsets = [0, 96], sizes = [8, 32], strides = [1, 1]} : vector<8x128xf32> to vector<8x32xf32>
    %223 = arith.negf %222 : vector<8x32xf32>
    %224 = math.exp %223 : vector<8x32xf32>
    %cst_42 = arith.constant 1.000000e+00 : f32
    %225 = vector.broadcast %cst_42 : f32 to vector<8x32xf32>
    %226 = arith.addf %225, %224 : vector<8x32xf32>
    %227 = arith.divf %225, %226 : vector<8x32xf32>
    %228 = arith.mulf %219, %201 : vector<8x32xf32>
    %229 = arith.mulf %213, %221 : vector<8x32xf32>
    %230 = arith.addf %228, %229 : vector<8x32xf32>
    %231 = math.tanh %230 : vector<8x32xf32>
    %232 = arith.mulf %227, %231 : vector<8x32xf32>
    %233 = vector.extract_strided_slice %27 {offsets = [7, 0, 0], sizes = [1, 8, 128], strides = [1, 1, 1]} : vector<8x8x128xf32> to vector<1x8x128xf32>
    %234 = vector.shape_cast %233 : vector<1x8x128xf32> to vector<8x128xf32>
    %cst_43 = arith.constant dense<0.000000e+00> : vector<8x128xf32>
    %235 = tpu.matmul %232, %21, %cst_43 {dimension_numbers = #tpu.dot_dimension_numbers<[1], [0], [0], [1], [0, 0, 1, 1], [], []>} : vector<8x32xf32>, vector<32x128xf32>, vector<8x128xf32> -> vector<8x128xf32>
    %236 = arith.addf %234, %235 : vector<8x128xf32>
    %237 = vector.extract_strided_slice %236 {offsets = [0, 0], sizes = [8, 32], strides = [1, 1]} : vector<8x128xf32> to vector<8x32xf32>
    %238 = arith.negf %237 : vector<8x32xf32>
    %239 = math.exp %238 : vector<8x32xf32>
    %cst_44 = arith.constant 1.000000e+00 : f32
    %240 = vector.broadcast %cst_44 : f32 to vector<8x32xf32>
    %241 = arith.addf %240, %239 : vector<8x32xf32>
    %242 = arith.divf %240, %241 : vector<8x32xf32>
    %243 = vector.extract_strided_slice %236 {offsets = [0, 32], sizes = [8, 32], strides = [1, 1]} : vector<8x128xf32> to vector<8x32xf32>
    %244 = arith.negf %243 : vector<8x32xf32>
    %245 = math.exp %244 : vector<8x32xf32>
    %cst_45 = arith.constant 1.000000e+00 : f32
    %246 = vector.broadcast %cst_45 : f32 to vector<8x32xf32>
    %247 = arith.addf %246, %245 : vector<8x32xf32>
    %248 = arith.divf %246, %247 : vector<8x32xf32>
    %249 = vector.extract_strided_slice %236 {offsets = [0, 64], sizes = [8, 32], strides = [1, 1]} : vector<8x128xf32> to vector<8x32xf32>
    %250 = math.tanh %249 : vector<8x32xf32>
    %251 = vector.extract_strided_slice %236 {offsets = [0, 96], sizes = [8, 32], strides = [1, 1]} : vector<8x128xf32> to vector<8x32xf32>
    %252 = arith.negf %251 : vector<8x32xf32>
    %253 = math.exp %252 : vector<8x32xf32>
    %cst_46 = arith.constant 1.000000e+00 : f32
    %254 = vector.broadcast %cst_46 : f32 to vector<8x32xf32>
    %255 = arith.addf %254, %253 : vector<8x32xf32>
    %256 = arith.divf %254, %255 : vector<8x32xf32>
    %257 = arith.mulf %248, %230 : vector<8x32xf32>
    %258 = arith.mulf %242, %250 : vector<8x32xf32>
    %259 = arith.addf %257, %258 : vector<8x32xf32>
    %260 = math.tanh %259 : vector<8x32xf32>
    %261 = arith.mulf %256, %260 : vector<8x32xf32>
    %262 = vector.extract_strided_slice %27 {offsets = [0, 0, 0], sizes = [1, 8, 128], strides = [1, 1, 1]} : vector<8x8x128xf32> to vector<1x8x128xf32>
    %263 = vector.shape_cast %262 : vector<1x8x128xf32> to vector<8x128xf32>
    %cst_47 = arith.constant dense<0.000000e+00> : vector<8x128xf32>
    %264 = tpu.matmul %261, %21, %cst_47 {dimension_numbers = #tpu.dot_dimension_numbers<[1], [0], [0], [1], [0, 0, 1, 1], [], []>} : vector<8x32xf32>, vector<32x128xf32>, vector<8x128xf32> -> vector<8x128xf32>
    %265 = arith.addf %263, %264 : vector<8x128xf32>
    %266 = vector.extract_strided_slice %265 {offsets = [0, 0], sizes = [8, 32], strides = [1, 1]} : vector<8x128xf32> to vector<8x32xf32>
    %267 = arith.negf %266 : vector<8x32xf32>
    %268 = math.exp %267 : vector<8x32xf32>
    %cst_48 = arith.constant 1.000000e+00 : f32
    %269 = vector.broadcast %cst_48 : f32 to vector<8x32xf32>
    %270 = arith.addf %269, %268 : vector<8x32xf32>
    %271 = arith.divf %269, %270 : vector<8x32xf32>
    %272 = vector.extract_strided_slice %265 {offsets = [0, 32], sizes = [8, 32], strides = [1, 1]} : vector<8x128xf32> to vector<8x32xf32>
    %273 = arith.negf %272 : vector<8x32xf32>
    %274 = math.exp %273 : vector<8x32xf32>
    %cst_49 = arith.constant 1.000000e+00 : f32
    %275 = vector.broadcast %cst_49 : f32 to vector<8x32xf32>
    %276 = arith.addf %275, %274 : vector<8x32xf32>
    %277 = arith.divf %275, %276 : vector<8x32xf32>
    %278 = vector.extract_strided_slice %265 {offsets = [0, 64], sizes = [8, 32], strides = [1, 1]} : vector<8x128xf32> to vector<8x32xf32>
    %279 = math.tanh %278 : vector<8x32xf32>
    %280 = vector.extract_strided_slice %265 {offsets = [0, 96], sizes = [8, 32], strides = [1, 1]} : vector<8x128xf32> to vector<8x32xf32>
    %281 = arith.negf %280 : vector<8x32xf32>
    %282 = math.exp %281 : vector<8x32xf32>
    %cst_50 = arith.constant 1.000000e+00 : f32
    %283 = vector.broadcast %cst_50 : f32 to vector<8x32xf32>
    %284 = arith.addf %283, %282 : vector<8x32xf32>
    %285 = arith.divf %283, %284 : vector<8x32xf32>
    %286 = arith.mulf %277, %259 : vector<8x32xf32>
    %287 = arith.mulf %271, %279 : vector<8x32xf32>
    %288 = arith.addf %286, %287 : vector<8x32xf32>
    %289 = math.tanh %288 : vector<8x32xf32>
    %290 = arith.mulf %285, %289 : vector<8x32xf32>
    %291 = vector.extract_strided_slice %27 {offsets = [1, 0, 0], sizes = [1, 8, 128], strides = [1, 1, 1]} : vector<8x8x128xf32> to vector<1x8x128xf32>
    %292 = vector.shape_cast %291 : vector<1x8x128xf32> to vector<8x128xf32>
    %cst_51 = arith.constant dense<0.000000e+00> : vector<8x128xf32>
    %293 = tpu.matmul %290, %21, %cst_51 {dimension_numbers = #tpu.dot_dimension_numbers<[1], [0], [0], [1], [0, 0, 1, 1], [], []>} : vector<8x32xf32>, vector<32x128xf32>, vector<8x128xf32> -> vector<8x128xf32>
    %294 = arith.addf %292, %293 : vector<8x128xf32>
    %295 = vector.extract_strided_slice %294 {offsets = [0, 0], sizes = [8, 32], strides = [1, 1]} : vector<8x128xf32> to vector<8x32xf32>
    %296 = arith.negf %295 : vector<8x32xf32>
    %297 = math.exp %296 : vector<8x32xf32>
    %cst_52 = arith.constant 1.000000e+00 : f32
    %298 = vector.broadcast %cst_52 : f32 to vector<8x32xf32>
    %299 = arith.addf %298, %297 : vector<8x32xf32>
    %300 = arith.divf %298, %299 : vector<8x32xf32>
    %301 = vector.extract_strided_slice %294 {offsets = [0, 32], sizes = [8, 32], strides = [1, 1]} : vector<8x128xf32> to vector<8x32xf32>
    %302 = arith.negf %301 : vector<8x32xf32>
    %303 = math.exp %302 : vector<8x32xf32>
    %cst_53 = arith.constant 1.000000e+00 : f32
    %304 = vector.broadcast %cst_53 : f32 to vector<8x32xf32>
    %305 = arith.addf %304, %303 : vector<8x32xf32>
    %306 = arith.divf %304, %305 : vector<8x32xf32>
    %307 = vector.extract_strided_slice %294 {offsets = [0, 64], sizes = [8, 32], strides = [1, 1]} : vector<8x128xf32> to vector<8x32xf32>
    %308 = math.tanh %307 : vector<8x32xf32>
    %309 = vector.extract_strided_slice %294 {offsets = [0, 96], sizes = [8, 32], strides = [1, 1]} : vector<8x128xf32> to vector<8x32xf32>
    %310 = arith.negf %309 : vector<8x32xf32>
    %311 = math.exp %310 : vector<8x32xf32>
    %cst_54 = arith.constant 1.000000e+00 : f32
    %312 = vector.broadcast %cst_54 : f32 to vector<8x32xf32>
    %313 = arith.addf %312, %311 : vector<8x32xf32>
    %314 = arith.divf %312, %313 : vector<8x32xf32>
    %315 = arith.mulf %306, %288 : vector<8x32xf32>
    %316 = arith.mulf %300, %308 : vector<8x32xf32>
    %317 = arith.addf %315, %316 : vector<8x32xf32>
    %318 = math.tanh %317 : vector<8x32xf32>
    %319 = arith.mulf %314, %318 : vector<8x32xf32>
    %320 = vector.extract_strided_slice %27 {offsets = [2, 0, 0], sizes = [1, 8, 128], strides = [1, 1, 1]} : vector<8x8x128xf32> to vector<1x8x128xf32>
    %321 = vector.shape_cast %320 : vector<1x8x128xf32> to vector<8x128xf32>
    %cst_55 = arith.constant dense<0.000000e+00> : vector<8x128xf32>
    %322 = tpu.matmul %319, %21, %cst_55 {dimension_numbers = #tpu.dot_dimension_numbers<[1], [0], [0], [1], [0, 0, 1, 1], [], []>} : vector<8x32xf32>, vector<32x128xf32>, vector<8x128xf32> -> vector<8x128xf32>
    %323 = arith.addf %321, %322 : vector<8x128xf32>
    %324 = vector.extract_strided_slice %323 {offsets = [0, 0], sizes = [8, 32], strides = [1, 1]} : vector<8x128xf32> to vector<8x32xf32>
    %325 = arith.negf %324 : vector<8x32xf32>
    %326 = math.exp %325 : vector<8x32xf32>
    %cst_56 = arith.constant 1.000000e+00 : f32
    %327 = vector.broadcast %cst_56 : f32 to vector<8x32xf32>
    %328 = arith.addf %327, %326 : vector<8x32xf32>
    %329 = arith.divf %327, %328 : vector<8x32xf32>
    %330 = vector.extract_strided_slice %323 {offsets = [0, 32], sizes = [8, 32], strides = [1, 1]} : vector<8x128xf32> to vector<8x32xf32>
    %331 = arith.negf %330 : vector<8x32xf32>
    %332 = math.exp %331 : vector<8x32xf32>
    %cst_57 = arith.constant 1.000000e+00 : f32
    %333 = vector.broadcast %cst_57 : f32 to vector<8x32xf32>
    %334 = arith.addf %333, %332 : vector<8x32xf32>
    %335 = arith.divf %333, %334 : vector<8x32xf32>
    %336 = vector.extract_strided_slice %323 {offsets = [0, 64], sizes = [8, 32], strides = [1, 1]} : vector<8x128xf32> to vector<8x32xf32>
    %337 = math.tanh %336 : vector<8x32xf32>
    %338 = vector.extract_strided_slice %323 {offsets = [0, 96], sizes = [8, 32], strides = [1, 1]} : vector<8x128xf32> to vector<8x32xf32>
    %339 = arith.negf %338 : vector<8x32xf32>
    %340 = math.exp %339 : vector<8x32xf32>
    %cst_58 = arith.constant 1.000000e+00 : f32
    %341 = vector.broadcast %cst_58 : f32 to vector<8x32xf32>
    %342 = arith.addf %341, %340 : vector<8x32xf32>
    %343 = arith.divf %341, %342 : vector<8x32xf32>
    %344 = arith.mulf %335, %317 : vector<8x32xf32>
    %345 = arith.mulf %329, %337 : vector<8x32xf32>
    %346 = arith.addf %344, %345 : vector<8x32xf32>
    %347 = math.tanh %346 : vector<8x32xf32>
    %348 = arith.mulf %343, %347 : vector<8x32xf32>
    %349 = vector.extract_strided_slice %27 {offsets = [3, 0, 0], sizes = [1, 8, 128], strides = [1, 1, 1]} : vector<8x8x128xf32> to vector<1x8x128xf32>
    %350 = vector.shape_cast %349 : vector<1x8x128xf32> to vector<8x128xf32>
    %cst_59 = arith.constant dense<0.000000e+00> : vector<8x128xf32>
    %351 = tpu.matmul %348, %21, %cst_59 {dimension_numbers = #tpu.dot_dimension_numbers<[1], [0], [0], [1], [0, 0, 1, 1], [], []>} : vector<8x32xf32>, vector<32x128xf32>, vector<8x128xf32> -> vector<8x128xf32>
    %352 = arith.addf %350, %351 : vector<8x128xf32>
    %353 = vector.extract_strided_slice %352 {offsets = [0, 0], sizes = [8, 32], strides = [1, 1]} : vector<8x128xf32> to vector<8x32xf32>
    %354 = arith.negf %353 : vector<8x32xf32>
    %355 = math.exp %354 : vector<8x32xf32>
    %cst_60 = arith.constant 1.000000e+00 : f32
    %356 = vector.broadcast %cst_60 : f32 to vector<8x32xf32>
    %357 = arith.addf %356, %355 : vector<8x32xf32>
    %358 = arith.divf %356, %357 : vector<8x32xf32>
    %359 = vector.extract_strided_slice %352 {offsets = [0, 32], sizes = [8, 32], strides = [1, 1]} : vector<8x128xf32> to vector<8x32xf32>
    %360 = arith.negf %359 : vector<8x32xf32>
    %361 = math.exp %360 : vector<8x32xf32>
    %cst_61 = arith.constant 1.000000e+00 : f32
    %362 = vector.broadcast %cst_61 : f32 to vector<8x32xf32>
    %363 = arith.addf %362, %361 : vector<8x32xf32>
    %364 = arith.divf %362, %363 : vector<8x32xf32>
    %365 = vector.extract_strided_slice %352 {offsets = [0, 64], sizes = [8, 32], strides = [1, 1]} : vector<8x128xf32> to vector<8x32xf32>
    %366 = math.tanh %365 : vector<8x32xf32>
    %367 = vector.extract_strided_slice %352 {offsets = [0, 96], sizes = [8, 32], strides = [1, 1]} : vector<8x128xf32> to vector<8x32xf32>
    %368 = arith.negf %367 : vector<8x32xf32>
    %369 = math.exp %368 : vector<8x32xf32>
    %cst_62 = arith.constant 1.000000e+00 : f32
    %370 = vector.broadcast %cst_62 : f32 to vector<8x32xf32>
    %371 = arith.addf %370, %369 : vector<8x32xf32>
    %372 = arith.divf %370, %371 : vector<8x32xf32>
    %373 = arith.mulf %364, %346 : vector<8x32xf32>
    %374 = arith.mulf %358, %366 : vector<8x32xf32>
    %375 = arith.addf %373, %374 : vector<8x32xf32>
    %376 = math.tanh %375 : vector<8x32xf32>
    %377 = arith.mulf %372, %376 : vector<8x32xf32>
    %378 = vector.extract_strided_slice %27 {offsets = [4, 0, 0], sizes = [1, 8, 128], strides = [1, 1, 1]} : vector<8x8x128xf32> to vector<1x8x128xf32>
    %379 = vector.shape_cast %378 : vector<1x8x128xf32> to vector<8x128xf32>
    %cst_63 = arith.constant dense<0.000000e+00> : vector<8x128xf32>
    %380 = tpu.matmul %377, %21, %cst_63 {dimension_numbers = #tpu.dot_dimension_numbers<[1], [0], [0], [1], [0, 0, 1, 1], [], []>} : vector<8x32xf32>, vector<32x128xf32>, vector<8x128xf32> -> vector<8x128xf32>
    %381 = arith.addf %379, %380 : vector<8x128xf32>
    %382 = vector.extract_strided_slice %381 {offsets = [0, 0], sizes = [8, 32], strides = [1, 1]} : vector<8x128xf32> to vector<8x32xf32>
    %383 = arith.negf %382 : vector<8x32xf32>
    %384 = math.exp %383 : vector<8x32xf32>
    %cst_64 = arith.constant 1.000000e+00 : f32
    %385 = vector.broadcast %cst_64 : f32 to vector<8x32xf32>
    %386 = arith.addf %385, %384 : vector<8x32xf32>
    %387 = arith.divf %385, %386 : vector<8x32xf32>
    %388 = vector.extract_strided_slice %381 {offsets = [0, 32], sizes = [8, 32], strides = [1, 1]} : vector<8x128xf32> to vector<8x32xf32>
    %389 = arith.negf %388 : vector<8x32xf32>
    %390 = math.exp %389 : vector<8x32xf32>
    %cst_65 = arith.constant 1.000000e+00 : f32
    %391 = vector.broadcast %cst_65 : f32 to vector<8x32xf32>
    %392 = arith.addf %391, %390 : vector<8x32xf32>
    %393 = arith.divf %391, %392 : vector<8x32xf32>
    %394 = vector.extract_strided_slice %381 {offsets = [0, 64], sizes = [8, 32], strides = [1, 1]} : vector<8x128xf32> to vector<8x32xf32>
    %395 = math.tanh %394 : vector<8x32xf32>
    %396 = vector.extract_strided_slice %381 {offsets = [0, 96], sizes = [8, 32], strides = [1, 1]} : vector<8x128xf32> to vector<8x32xf32>
    %397 = arith.negf %396 : vector<8x32xf32>
    %398 = math.exp %397 : vector<8x32xf32>
    %cst_66 = arith.constant 1.000000e+00 : f32
    %399 = vector.broadcast %cst_66 : f32 to vector<8x32xf32>
    %400 = arith.addf %399, %398 : vector<8x32xf32>
    %401 = arith.divf %399, %400 : vector<8x32xf32>
    %402 = arith.mulf %393, %375 : vector<8x32xf32>
    %403 = arith.mulf %387, %395 : vector<8x32xf32>
    %404 = arith.addf %402, %403 : vector<8x32xf32>
    %405 = math.tanh %404 : vector<8x32xf32>
    %406 = arith.mulf %401, %405 : vector<8x32xf32>
    %407 = vector.extract_strided_slice %27 {offsets = [5, 0, 0], sizes = [1, 8, 128], strides = [1, 1, 1]} : vector<8x8x128xf32> to vector<1x8x128xf32>
    %408 = vector.shape_cast %407 : vector<1x8x128xf32> to vector<8x128xf32>
    %cst_67 = arith.constant dense<0.000000e+00> : vector<8x128xf32>
    %409 = tpu.matmul %406, %21, %cst_67 {dimension_numbers = #tpu.dot_dimension_numbers<[1], [0], [0], [1], [0, 0, 1, 1], [], []>} : vector<8x32xf32>, vector<32x128xf32>, vector<8x128xf32> -> vector<8x128xf32>
    %410 = arith.addf %408, %409 : vector<8x128xf32>
    %411 = vector.extract_strided_slice %410 {offsets = [0, 0], sizes = [8, 32], strides = [1, 1]} : vector<8x128xf32> to vector<8x32xf32>
    %412 = arith.negf %411 : vector<8x32xf32>
    %413 = math.exp %412 : vector<8x32xf32>
    %cst_68 = arith.constant 1.000000e+00 : f32
    %414 = vector.broadcast %cst_68 : f32 to vector<8x32xf32>
    %415 = arith.addf %414, %413 : vector<8x32xf32>
    %416 = arith.divf %414, %415 : vector<8x32xf32>
    %417 = vector.extract_strided_slice %410 {offsets = [0, 32], sizes = [8, 32], strides = [1, 1]} : vector<8x128xf32> to vector<8x32xf32>
    %418 = arith.negf %417 : vector<8x32xf32>
    %419 = math.exp %418 : vector<8x32xf32>
    %cst_69 = arith.constant 1.000000e+00 : f32
    %420 = vector.broadcast %cst_69 : f32 to vector<8x32xf32>
    %421 = arith.addf %420, %419 : vector<8x32xf32>
    %422 = arith.divf %420, %421 : vector<8x32xf32>
    %423 = vector.extract_strided_slice %410 {offsets = [0, 64], sizes = [8, 32], strides = [1, 1]} : vector<8x128xf32> to vector<8x32xf32>
    %424 = math.tanh %423 : vector<8x32xf32>
    %425 = vector.extract_strided_slice %410 {offsets = [0, 96], sizes = [8, 32], strides = [1, 1]} : vector<8x128xf32> to vector<8x32xf32>
    %426 = arith.negf %425 : vector<8x32xf32>
    %427 = math.exp %426 : vector<8x32xf32>
    %cst_70 = arith.constant 1.000000e+00 : f32
    %428 = vector.broadcast %cst_70 : f32 to vector<8x32xf32>
    %429 = arith.addf %428, %427 : vector<8x32xf32>
    %430 = arith.divf %428, %429 : vector<8x32xf32>
    %431 = arith.mulf %422, %404 : vector<8x32xf32>
    %432 = arith.mulf %416, %424 : vector<8x32xf32>
    %433 = arith.addf %431, %432 : vector<8x32xf32>
    %434 = math.tanh %433 : vector<8x32xf32>
    %435 = arith.mulf %430, %434 : vector<8x32xf32>
    %436 = vector.extract_strided_slice %27 {offsets = [6, 0, 0], sizes = [1, 8, 128], strides = [1, 1, 1]} : vector<8x8x128xf32> to vector<1x8x128xf32>
    %437 = vector.shape_cast %436 : vector<1x8x128xf32> to vector<8x128xf32>
    %cst_71 = arith.constant dense<0.000000e+00> : vector<8x128xf32>
    %438 = tpu.matmul %435, %21, %cst_71 {dimension_numbers = #tpu.dot_dimension_numbers<[1], [0], [0], [1], [0, 0, 1, 1], [], []>} : vector<8x32xf32>, vector<32x128xf32>, vector<8x128xf32> -> vector<8x128xf32>
    %439 = arith.addf %437, %438 : vector<8x128xf32>
    %440 = vector.extract_strided_slice %439 {offsets = [0, 0], sizes = [8, 32], strides = [1, 1]} : vector<8x128xf32> to vector<8x32xf32>
    %441 = arith.negf %440 : vector<8x32xf32>
    %442 = math.exp %441 : vector<8x32xf32>
    %cst_72 = arith.constant 1.000000e+00 : f32
    %443 = vector.broadcast %cst_72 : f32 to vector<8x32xf32>
    %444 = arith.addf %443, %442 : vector<8x32xf32>
    %445 = arith.divf %443, %444 : vector<8x32xf32>
    %446 = vector.extract_strided_slice %439 {offsets = [0, 32], sizes = [8, 32], strides = [1, 1]} : vector<8x128xf32> to vector<8x32xf32>
    %447 = arith.negf %446 : vector<8x32xf32>
    %448 = math.exp %447 : vector<8x32xf32>
    %cst_73 = arith.constant 1.000000e+00 : f32
    %449 = vector.broadcast %cst_73 : f32 to vector<8x32xf32>
    %450 = arith.addf %449, %448 : vector<8x32xf32>
    %451 = arith.divf %449, %450 : vector<8x32xf32>
    %452 = vector.extract_strided_slice %439 {offsets = [0, 64], sizes = [8, 32], strides = [1, 1]} : vector<8x128xf32> to vector<8x32xf32>
    %453 = math.tanh %452 : vector<8x32xf32>
    %454 = vector.extract_strided_slice %439 {offsets = [0, 96], sizes = [8, 32], strides = [1, 1]} : vector<8x128xf32> to vector<8x32xf32>
    %455 = arith.negf %454 : vector<8x32xf32>
    %456 = math.exp %455 : vector<8x32xf32>
    %cst_74 = arith.constant 1.000000e+00 : f32
    %457 = vector.broadcast %cst_74 : f32 to vector<8x32xf32>
    %458 = arith.addf %457, %456 : vector<8x32xf32>
    %459 = arith.divf %457, %458 : vector<8x32xf32>
    %460 = arith.mulf %451, %433 : vector<8x32xf32>
    %461 = arith.mulf %445, %453 : vector<8x32xf32>
    %462 = arith.addf %460, %461 : vector<8x32xf32>
    %463 = math.tanh %462 : vector<8x32xf32>
    %464 = arith.mulf %459, %463 : vector<8x32xf32>
    %465 = vector.extract_strided_slice %27 {offsets = [7, 0, 0], sizes = [1, 8, 128], strides = [1, 1, 1]} : vector<8x8x128xf32> to vector<1x8x128xf32>
    %466 = vector.shape_cast %465 : vector<1x8x128xf32> to vector<8x128xf32>
    %cst_75 = arith.constant dense<0.000000e+00> : vector<8x128xf32>
    %467 = tpu.matmul %464, %21, %cst_75 {dimension_numbers = #tpu.dot_dimension_numbers<[1], [0], [0], [1], [0, 0, 1, 1], [], []>} : vector<8x32xf32>, vector<32x128xf32>, vector<8x128xf32> -> vector<8x128xf32>
    %468 = arith.addf %466, %467 : vector<8x128xf32>
    %469 = vector.extract_strided_slice %468 {offsets = [0, 0], sizes = [8, 32], strides = [1, 1]} : vector<8x128xf32> to vector<8x32xf32>
    %470 = arith.negf %469 : vector<8x32xf32>
    %471 = math.exp %470 : vector<8x32xf32>
    %cst_76 = arith.constant 1.000000e+00 : f32
    %472 = vector.broadcast %cst_76 : f32 to vector<8x32xf32>
    %473 = arith.addf %472, %471 : vector<8x32xf32>
    %474 = arith.divf %472, %473 : vector<8x32xf32>
    %475 = vector.extract_strided_slice %468 {offsets = [0, 32], sizes = [8, 32], strides = [1, 1]} : vector<8x128xf32> to vector<8x32xf32>
    %476 = arith.negf %475 : vector<8x32xf32>
    %477 = math.exp %476 : vector<8x32xf32>
    %cst_77 = arith.constant 1.000000e+00 : f32
    %478 = vector.broadcast %cst_77 : f32 to vector<8x32xf32>
    %479 = arith.addf %478, %477 : vector<8x32xf32>
    %480 = arith.divf %478, %479 : vector<8x32xf32>
    %481 = vector.extract_strided_slice %468 {offsets = [0, 64], sizes = [8, 32], strides = [1, 1]} : vector<8x128xf32> to vector<8x32xf32>
    %482 = math.tanh %481 : vector<8x32xf32>
    %483 = vector.extract_strided_slice %468 {offsets = [0, 96], sizes = [8, 32], strides = [1, 1]} : vector<8x128xf32> to vector<8x32xf32>
    %484 = arith.negf %483 : vector<8x32xf32>
    %485 = math.exp %484 : vector<8x32xf32>
    %cst_78 = arith.constant 1.000000e+00 : f32
    %486 = vector.broadcast %cst_78 : f32 to vector<8x32xf32>
    %487 = arith.addf %486, %485 : vector<8x32xf32>
    %488 = arith.divf %486, %487 : vector<8x32xf32>
    %489 = arith.mulf %480, %462 : vector<8x32xf32>
    %490 = arith.mulf %474, %482 : vector<8x32xf32>
    %491 = arith.addf %489, %490 : vector<8x32xf32>
    %492 = math.tanh %491 : vector<8x32xf32>
    %493 = arith.mulf %488, %492 : vector<8x32xf32>
    %c0_79 = arith.constant 0 : index
    %c0_80 = arith.constant 0 : index
    %494 = vector.load %arg9[%c0_79, %c0_80] : memref<8x32xf32, #tpu.memory_space<vmem>>, vector<8x32xf32>
    tpu.vector_store %arg9[%c0_79, %c0_80], %493 {strides = array<i32>} : memref<8x32xf32, #tpu.memory_space<vmem>>, vector<8x32xf32>,
    %c0_81 = arith.constant 0 : index
    %c0_82 = arith.constant 0 : index
    %495 = vector.load %arg10[%c0_81, %c0_82] : memref<8x32xf32, #tpu.memory_space<vmem>>, vector<8x32xf32>
    tpu.vector_store %arg10[%c0_81, %c0_82], %491 {strides = array<i32>} : memref<8x32xf32, #tpu.memory_space<vmem>>, vector<8x32xf32>,
    %496 = vector.shape_cast %290 : vector<8x32xf32> to vector<1x8x32xf32>
    %497 = vector.shape_cast %319 : vector<8x32xf32> to vector<1x8x32xf32>
    %498 = vector.shape_cast %348 : vector<8x32xf32> to vector<1x8x32xf32>
    %499 = vector.shape_cast %377 : vector<8x32xf32> to vector<1x8x32xf32>
    %500 = vector.shape_cast %406 : vector<8x32xf32> to vector<1x8x32xf32>
    %501 = vector.shape_cast %435 : vector<8x32xf32> to vector<1x8x32xf32>
    %502 = vector.shape_cast %464 : vector<8x32xf32> to vector<1x8x32xf32>
    %503 = vector.shape_cast %493 : vector<8x32xf32> to vector<1x8x32xf32>
    %504 = tpu.concatenate %496, %497, %498, %499, %500, %501, %502, %503 in 0 : vector<1x8x32xf32>, vector<1x8x32xf32>, vector<1x8x32xf32>, vector<1x8x32xf32>, vector<1x8x32xf32>, vector<1x8x32xf32>, vector<1x8x32xf32>, vector<1x8x32xf32> -> vector<8x8x32xf32>
    %505 = vector.shape_cast %504 : vector<8x8x32xf32> to vector<64x32xf32>
    %c0_83 = arith.constant 0 : index
    %c0_84 = arith.constant 0 : index
    %506 = vector.load %arg4[%c0_83, %c0_84] : memref<32x32xf32, #tpu.memory_space<vmem>>, vector<32x32xf32>
    %cst_85 = arith.constant dense<0.000000e+00> : vector<64x32xf32>
    %507 = tpu.matmul %505, %506, %cst_85 {dimension_numbers = #tpu.dot_dimension_numbers<[1], [0], [0], [1], [0, 0, 1, 1], [], []>} : vector<64x32xf32>, vector<32x32xf32>, vector<64x32xf32> -> vector<64x32xf32>
    %c0_86 = arith.constant 0 : index
    %c0_87 = arith.constant 0 : index
    %508 = vector.load %arg5[%c0_86, %c0_87] : memref<1x32xf32, #tpu.memory_space<vmem>>, vector<1x32xf32>
    %509 = vector.broadcast %508 : vector<1x32xf32> to vector<64x32xf32>
    %510 = arith.addf %507, %509 : vector<64x32xf32>
    %c0_88 = arith.constant 0 : index
    %c0_89 = arith.constant 0 : index
    %511 = vector.load %arg6[%c0_88, %c0_89] : memref<32x128xf32, #tpu.memory_space<vmem>>, vector<32x128xf32>
    %cst_90 = arith.constant dense<0.000000e+00> : vector<64x128xf32>
    %512 = tpu.matmul %510, %511, %cst_90 {dimension_numbers = #tpu.dot_dimension_numbers<[1], [0], [0], [1], [0, 0, 1, 1], [], []>} : vector<64x32xf32>, vector<32x128xf32>, vector<64x128xf32> -> vector<64x128xf32>
    %c0_91 = arith.constant 0 : index
    %c0_92 = arith.constant 0 : index
    %513 = vector.load %arg7[%c0_91, %c0_92] : memref<1x128xf32, #tpu.memory_space<vmem>>, vector<1x128xf32>
    %514 = vector.broadcast %513 : vector<1x128xf32> to vector<64x128xf32>
    %515 = arith.addf %512, %514 : vector<64x128xf32>
    %516 = vector.shape_cast %515 : vector<64x128xf32> to vector<8x8x128xf32>
    %c0_93 = arith.constant 0 : index
    %c0_94 = arith.constant 0 : index
    %c0_95 = arith.constant 0 : index
    %517 = vector.load %arg8[%c0_93, %c0_94, %c0_95] : memref<8x8x128xf32, #tpu.memory_space<vmem>>, vector<8x8x128xf32>
    tpu.vector_store %arg8[%c0_93, %c0_94, %c0_95], %516 {strides = array<i32>} : memref<8x8x128xf32, #tpu.memory_space<vmem>>, vector<8x8x128xf32>,
    return
  }
}

</mosaic_0001>

<llo_original>
// kernel: deepar_forward.1
$region0: #{deepar_forward.1}
  #allocation0 [shape = 'u32[]', space=smem, size = 0x4, offset = 0x4, fixed_abs, tag = 'smem constant byte address 0x4 - core index']
  #allocation1 [shape = 'u32[144,128]{1,0:T(1,128)}', space=vmem, size = 0x12000, scoped, tag = 'internal scratch']
  %s0 = inlined_call_operand.vmem [shape: f32[8,8,4], index: 0, kind: input, shape index: {}]
  %s1 = inlined_call_operand.vmem [shape: f32[4,128], index: 1, kind: input, shape index: {}]
  %s2 = inlined_call_operand.vmem [shape: f32[32,128], index: 2, kind: input, shape index: {}]
  %s3 = inlined_call_operand.vmem [shape: f32[1,128], index: 3, kind: input, shape index: {}]
  %s4 = inlined_call_operand.vmem [shape: f32[32,32], index: 4, kind: input, shape index: {}]
  %s5 = inlined_call_operand.vmem [shape: f32[1,32], index: 5, kind: input, shape index: {}]
  %s6 = inlined_call_operand.vmem [shape: f32[32,128], index: 6, kind: input, shape index: {}]
  %s7 = inlined_call_operand.vmem [shape: f32[1,128], index: 7, kind: input, shape index: {}]
  %s8 = inlined_call_operand.vmem [shape: f32[8,8,128], index: 8, kind: output, shape index: {0}]
  %s9 = inlined_call_operand.vmem [shape: f32[8,32], index: 9, kind: output, shape index: {1}]
  %s10 = inlined_call_operand.vmem [shape: f32[8,32], index: 10, kind: output, shape index: {2}]
  %11 = xla_tuple %s8, %s9, %s10
  %s12 = sld [smem:[#allocation0]]
  $region58: #{deepar_forward.1} parent=0
    _
  %s14 = ssub.s32 1, %s12
  %s15 = scalar_select 0, %s14, %s12
  // Predicated region
  $region2: #{deepar_forward.1} parent=0 // pred_check
    _
  $region3: #{deepar_forward.1} parent=0 // pred_check_branch
    %17 = sbr.rel (0) target = $region5
  $region4: #{deepar_forward.1} parent=0 // pred_region
    _
  $region5: #{deepar_forward.1} parent=0 // pred_fallthru
    _
  // Predicated region
  $region6: #{deepar_forward.1} parent=0 // pred_check
    _
  $region7: #{deepar_forward.1} parent=0 // pred_check_branch
    %19 = sbr.rel (0) target = $region9
  $region8: #{deepar_forward.1} parent=0 // pred_region
    _
  $region9: #{deepar_forward.1} parent=0 // pred_fallthru
    _
  // Predicated region
  $region10: #{deepar_forward.1} parent=0 // pred_check
    _
  $region11: #{deepar_forward.1} parent=0 // pred_check_branch
    %21 = sbr.rel (0) target = $region13
  $region12: #{deepar_forward.1} parent=0 // pred_region
    _
  $region13: #{deepar_forward.1} parent=0 // pred_fallthru
    _
  // Predicated region
  $region14: #{deepar_forward.1} parent=0 // pred_check
    _
  $region15: #{deepar_forward.1} parent=0 // pred_check_branch
    %23 = sbr.rel (0) target = $region17
  $region16: #{deepar_forward.1} parent=0 // pred_region
    _
  $region17: #{deepar_forward.1} parent=0 // pred_fallthru
    _
  // Predicated region
  $region18: #{deepar_forward.1} parent=0 // pred_check
    _
  $region19: #{deepar_forward.1} parent=0 // pred_check_branch
    %25 = sbr.rel (0) target = $region21
  $region20: #{deepar_forward.1} parent=0 // pred_region
    _
  $region21: #{deepar_forward.1} parent=0 // pred_fallthru
    _
  // Predicated region
  $region22: #{deepar_forward.1} parent=0 // pred_check
    _
  $region23: #{deepar_forward.1} parent=0 // pred_check_branch
    %27 = sbr.rel (0) target = $region25
  $region24: #{deepar_forward.1} parent=0 // pred_region
    _
  $region25: #{deepar_forward.1} parent=0 // pred_fallthru
    _
  // Predicated region
  $region26: #{deepar_forward.1} parent=0 // pred_check
    _
  $region27: #{deepar_forward.1} parent=0 // pred_check_branch
    %29 = sbr.rel (0) target = $region29
  $region28: #{deepar_forward.1} parent=0 // pred_region
    _
  $region29: #{deepar_forward.1} parent=0 // pred_fallthru
    _
  // Predicated region
  $region30: #{deepar_forward.1} parent=0 // pred_check
    _
  $region31: #{deepar_forward.1} parent=0 // pred_check_branch
    %31 = sbr.rel (0) target = $region33
  $region32: #{deepar_forward.1} parent=0 // pred_region
    _
  $region33: #{deepar_forward.1} parent=0 // pred_fallthru
    _
  %v32 = vld [vmem:[%s0] sm:$0xff]
  %v33 = vld [vmem:[%s0 + $0x8] sm:$0xff]
  %v34 = vld [vmem:[%s0 + $0x10] sm:$0xff]
  %v35 = vld [vmem:[%s0 + $0x18] sm:$0xff]
  %v36 = vld [vmem:[%s0 + $0x20] sm:$0xff]
  %v37 = vld [vmem:[%s0 + $0x28] sm:$0xff]
  %v38 = vld [vmem:[%s0 + $0x30] sm:$0xff]
  %v39 = vld [vmem:[%s0 + $0x38] sm:$0xff]
  %vm40 = vcmask 31744
  %v41 = vsel %vm40, %v32, 0.0
  %42 = vadd.xlane.f32.xlu0 %v41
  %v43 = vpop.xlane.xlu0 %42
  %v44 = vsel %vm40, %v33, 0.0
  %45 = vadd.xlane.f32.xlu0 %v44
  %v46 = vpop.xlane.xlu0 %45
  %v47 = vsel %vm40, %v34, 0.0
  %48 = vadd.xlane.f32.xlu0 %v47
  %v49 = vpop.xlane.xlu0 %48
  %v50 = vsel %vm40, %v35, 0.0
  %51 = vadd.xlane.f32.xlu0 %v50
  %v52 = vpop.xlane.xlu0 %51
  %v53 = vsel %vm40, %v36, 0.0
  %54 = vadd.xlane.f32.xlu0 %v53
  %v55 = vpop.xlane.xlu0 %54
  %v56 = vsel %vm40, %v37, 0.0
  %57 = vadd.xlane.f32.xlu0 %v56
  %v58 = vpop.xlane.xlu0 %57
  %v59 = vsel %vm40, %v38, 0.0
  %60 = vadd.xlane.f32.xlu0 %v59
  %v61 = vpop.xlane.xlu0 %60
  %v62 = vsel %vm40, %v39, 0.0
  %63 = vadd.xlane.f32.xlu0 %v62
  %v64 = vpop.xlane.xlu0 %63
  %v65 = vrcp.pop 4.0
  %v66 = vmul.f32 %v43, %v65
  %v67 = vmul.f32 %v46, %v65
  %v68 = vmul.f32 %v49, %v65
  %v69 = vmul.f32 %v52, %v65
  %v70 = vmul.f32 %v55, %v65
  %v71 = vmul.f32 %v58, %v65
  %v72 = vmul.f32 %v61, %v65
  %v73 = vmul.f32 %v64, %v65
  %v74 = vsub.f32 %v32, %v66
  %v75 = vsub.f32 %v33, %v67
  %v76 = vsub.f32 %v34, %v68
  %v77 = vsub.f32 %v35, %v69
  %v78 = vsub.f32 %v36, %v70
  %v79 = vsub.f32 %v37, %v71
  %v80 = vsub.f32 %v38, %v72
  %v81 = vsub.f32 %v39, %v73
  %v82 = vmul.f32 %v74, %v74
  %v83 = vmul.f32 %v75, %v75
  %v84 = vmul.f32 %v76, %v76
  %v85 = vmul.f32 %v77, %v77
  %v86 = vmul.f32 %v78, %v78
  %v87 = vmul.f32 %v79, %v79
  %v88 = vmul.f32 %v80, %v80
  %v89 = vmul.f32 %v81, %v81
  %v90 = vsel %vm40, %v82, 0.0
  %91 = vadd.xlane.f32.xlu0 %v90
  %v92 = vpop.xlane.xlu0 %91
  %v93 = vsel %vm40, %v83, 0.0
  %94 = vadd.xlane.f32.xlu0 %v93
  %v95 = vpop.xlane.xlu0 %94
  %v96 = vsel %vm40, %v84, 0.0
  %97 = vadd.xlane.f32.xlu0 %v96
  %v98 = vpop.xlane.xlu0 %97
  %v99 = vsel %vm40, %v85, 0.0
  %100 = vadd.xlane.f32.xlu0 %v99
  %v101 = vpop.xlane.xlu0 %100
  %v102 = vsel %vm40, %v86, 0.0
  %103 = vadd.xlane.f32.xlu0 %v102
  %v104 = vpop.xlane.xlu0 %103
  %v105 = vsel %vm40, %v87, 0.0
  %106 = vadd.xlane.f32.xlu0 %v105
  %v107 = vpop.xlane.xlu0 %106
  %v108 = vsel %vm40, %v88, 0.0
  %109 = vadd.xlane.f32.xlu0 %v108
  %v110 = vpop.xlane.xlu0 %109
  %v111 = vsel %vm40, %v89, 0.0
  %112 = vadd.xlane.f32.xlu0 %v111
  %v113 = vpop.xlane.xlu0 %112
  %v114 = vmul.f32 %v92, %v65
  %v115 = vmul.f32 %v95, %v65
  %v116 = vmul.f32 %v98, %v65
  %v117 = vmul.f32 %v101, %v65
  %v118 = vmul.f32 %v104, %v65
  %v119 = vmul.f32 %v107, %v65
  %v120 = vmul.f32 %v110, %v65
  %v121 = vmul.f32 %v113, %v65
  %v122 = vrsqrt.pop %v114
  %v123 = vmul.f32 %v114, %v122
  %vm124 = vcmp.eq.f32.partialorder %v114, inf
  %v125 = vsel %vm124, %v114, %v123
  %vm126 = vcmp.eq.f32.partialorder %v114, 0.0
  %v127 = vand.u32 %v114, 2147483648
  %v128 = vsel %vm126, %v127, %v125
  %v129 = vrsqrt.pop %v115
  %v130 = vmul.f32 %v115, %v129
  %vm131 = vcmp.eq.f32.partialorder %v115, inf
  %v132 = vsel %vm131, %v115, %v130
  %vm133 = vcmp.eq.f32.partialorder %v115, 0.0
  %v134 = vand.u32 %v115, 2147483648
  %v135 = vsel %vm133, %v134, %v132
  %v136 = vrsqrt.pop %v116
  %v137 = vmul.f32 %v116, %v136
  %vm138 = vcmp.eq.f32.partialorder %v116, inf
  %v139 = vsel %vm138, %v116, %v137
  %vm140 = vcmp.eq.f32.partialorder %v116, 0.0
  %v141 = vand.u32 %v116, 2147483648
  %v142 = vsel %vm140, %v141, %v139
  %v143 = vrsqrt.pop %v117
  %v144 = vmul.f32 %v117, %v143
  %vm145 = vcmp.eq.f32.partialorder %v117, inf
  %v146 = vsel %vm145, %v117, %v144
  %vm147 = vcmp.eq.f32.partialorder %v117, 0.0
  %v148 = vand.u32 %v117, 2147483648
  %v149 = vsel %vm147, %v148, %v146
  %v150 = vrsqrt.pop %v118
  %v151 = vmul.f32 %v118, %v150
  %vm152 = vcmp.eq.f32.partialorder %v118, inf
  %v153 = vsel %vm152, %v118, %v151
  %vm154 = vcmp.eq.f32.partialorder %v118, 0.0
  %v155 = vand.u32 %v118, 2147483648
  %v156 = vsel %vm154, %v155, %v153
  %v157 = vrsqrt.pop %v119
  %v158 = vmul.f32 %v119, %v157
  %vm159 = vcmp.eq.f32.partialorder %v119, inf
  %v160 = vsel %vm159, %v119, %v158
  %vm161 = vcmp.eq.f32.partialorder %v119, 0.0
  %v162 = vand.u32 %v119, 2147483648
  %v163 = vsel %vm161, %v162, %v160
  %v164 = vrsqrt.pop %v120
  %v165 = vmul.f32 %v120, %v164
  %vm166 = vcmp.eq.f32.partialorder %v120, inf
  %v167 = vsel %vm166, %v120, %v165
  %vm168 = vcmp.eq.f32.partialorder %v120, 0.0
  %v169 = vand.u32 %v120, 2147483648
  %v170 = vsel %vm168, %v169, %v167
  %v171 = vrsqrt.pop %v121
  %v172 = vmul.f32 %v121, %v171
  %vm173 = vcmp.eq.f32.partialorder %v121, inf
  %v174 = vsel %vm173, %v121, %v172
  %vm175 = vcmp.eq.f32.partialorder %v121, 0.0
  %v176 = vand.u32 %v121, 2147483648
  %v177 = vsel %vm175, %v176, %v174
  %v178 = vrsqrt.pop %v128
  %v179 = vmul.f32 %v128, %v178
  %vm180 = vcmp.eq.f32.partialorder %v128, inf
  %v181 = vsel %vm180, %v128, %v179
  %vm182 = vcmp.eq.f32.partialorder %v128, 0.0
  %v183 = vand.u32 %v128, 2147483648
  %v184 = vsel %vm182, %v183, %v181
  %v185 = vrsqrt.pop %v135
  %v186 = vmul.f32 %v135, %v185
  %vm187 = vcmp.eq.f32.partialorder %v135, inf
  %v188 = vsel %vm187, %v135, %v186
  %vm189 = vcmp.eq.f32.partialorder %v135, 0.0
  %v190 = vand.u32 %v135, 2147483648
  %v191 = vsel %vm189, %v190, %v188
  %v192 = vrsqrt.pop %v142
  %v193 = vmul.f32 %v142, %v192
  %vm194 = vcmp.eq.f32.partialorder %v142, inf
  %v195 = vsel %vm194, %v142, %v193
  %vm196 = vcmp.eq.f32.partialorder %v142, 0.0
  %v197 = vand.u32 %v142, 2147483648
  %v198 = vsel %vm196, %v197, %v195
  %v199 = vrsqrt.pop %v149
  %v200 = vmul.f32 %v149, %v199
  %vm201 = vcmp.eq.f32.partialorder %v149, inf
  %v202 = vsel %vm201, %v149, %v200
  %vm203 = vcmp.eq.f32.partialorder %v149, 0.0
  %v204 = vand.u32 %v149, 2147483648
  %v205 = vsel %vm203, %v204, %v202
  %v206 = vrsqrt.pop %v156
  %v207 = vmul.f32 %v156, %v206
  %vm208 = vcmp.eq.f32.partialorder %v156, inf
  %v209 = vsel %vm208, %v156, %v207
  %vm210 = vcmp.eq.f32.partialorder %v156, 0.0
  %v211 = vand.u32 %v156, 2147483648
  %v212 = vsel %vm210, %v211, %v209
  %v213 = vrsqrt.pop %v163
  %v214 = vmul.f32 %v163, %v213
  %vm215 = vcmp.eq.f32.partialorder %v163, inf
  %v216 = vsel %vm215, %v163, %v214
  %vm217 = vcmp.eq.f32.partialorder %v163, 0.0
  %v218 = vand.u32 %v163, 2147483648
  %v219 = vsel %vm217, %v218, %v216
  %v220 = vrsqrt.pop %v170
  %v221 = vmul.f32 %v170, %v220
  %vm222 = vcmp.eq.f32.partialorder %v170, inf
  %v223 = vsel %vm222, %v170, %v221
  %vm224 = vcmp.eq.f32.partialorder %v170, 0.0
  %v225 = vand.u32 %v170, 2147483648
  %v226 = vsel %vm224, %v225, %v223
  %v227 = vrsqrt.pop %v177
  %v228 = vmul.f32 %v177, %v227
  %vm229 = vcmp.eq.f32.partialorder %v177, inf
  %v230 = vsel %vm229, %v177, %v228
  %vm231 = vcmp.eq.f32.partialorder %v177, 0.0
  %v232 = vand.u32 %v177, 2147483648
  %v233 = vsel %vm231, %v232, %v230
  %v234 = vadd.f32 %v184, 1e-10
  %v235 = vadd.f32 %v191, 1e-10
  %v236 = vadd.f32 %v198, 1e-10
  %v237 = vadd.f32 %v205, 1e-10
  %v238 = vadd.f32 %v212, 1e-10
  %v239 = vadd.f32 %v219, 1e-10
  %v240 = vadd.f32 %v226, 1e-10
  %v241 = vadd.f32 %v233, 1e-10
  %v242 = vrcp.pop %v234
  %v243 = vmul.f32 %v74, %v242
  %v244 = vrcp.pop %v235
  %v245 = vmul.f32 %v75, %v244
  %v246 = vrcp.pop %v236
  %v247 = vmul.f32 %v76, %v246
  %v248 = vrcp.pop %v237
  %v249 = vmul.f32 %v77, %v248
  %v250 = vrcp.pop %v238
  %v251 = vmul.f32 %v78, %v250
  %v252 = vrcp.pop %v239
  %v253 = vmul.f32 %v79, %v252
  %v254 = vrcp.pop %v240
  %v255 = vmul.f32 %v80, %v254
  %v256 = vrcp.pop %v241
  %v257 = vmul.f32 %v81, %v256
  %v258 = vld [vmem:[%s1] sm:$0xf]
  %v259 = vld [vmem:[%s2] sm:$0xff]
  %v260 = vld [vmem:[%s2 + $0x8] sm:$0xff]
  %v261 = vld [vmem:[%s2 + $0x10] sm:$0xff]
  %v262 = vld [vmem:[%s2 + $0x18] sm:$0xff]
  %v263 = vld [vmem:[%s3] sm:$0x1]
  %v265 = vlaneseq
  %v266 = vshrl.u32 %v265, 7
  %v267 = vsub.s32 0, %v266
  %v268 = vrot.slane %v263, %v267
  %v271 = vsel %vm40, %v243, 0
  %v274 = vsel %vm40, %v245, 0
  %v277 = vsel %vm40, %v247, 0
  %v280 = vsel %vm40, %v249, 0
  %v283 = vsel %vm40, %v251, 0
  %v286 = vsel %vm40, %v253, 0
  %v289 = vsel %vm40, %v255, 0
  %v292 = vsel %vm40, %v257, 0
  %vm294 = vcmask 1043456
  %v296 = vsel %vm294, %v258, 0
  %298 = vmatprep.subr.mxu0 0.0
  %299 = vmatpush1.msra.mxu0 0.0
  %300 = vmatprep.subr.mxu0 0.0
  %301 = vmatpush1.msra.mxu0 0.0
  %302 = vmatprep.subr.mxu0 0.0
  %303 = vmatpush1.msra.mxu0 0.0
  %304 = vmatprep.subr.mxu0 0.0
  %305 = vmatpush1.msra.mxu0 0.0
  %306 = vmatprep.subr.mxu0 0.0
  %307 = vmatpush1.msra.mxu0 0.0
  %308 = vmatprep.subr.mxu0 0.0
  %309 = vmatpush1.msra.mxu0 0.0
  %310 = vmatprep.subr.mxu0 0.0
  %311 = vmatpush1.msra.mxu0 0.0
  %312 = vmatprep.subr.mxu0 0.0
  %313 = vmatpush1.msra.mxu0 0.0
  %314 = vmatprep.subr.mxu0 0.0
  %315 = vmatpush1.msra.mxu0 0.0
  %316 = vmatprep.subr.mxu0 0.0
  %317 = vmatpush1.msra.mxu0 0.0
  %318 = vmatprep.subr.mxu0 0.0
  %319 = vmatpush1.msra.mxu0 0.0
  %320 = vmatprep.subr.mxu0 0.0
  %321 = vmatpush1.msra.mxu0 0.0
  %322 = vmatprep.subr.mxu0 0.0
  %323 = vmatpush1.msra.mxu0 0.0
  %324 = vmatprep.subr.mxu0 0.0
  %325 = vmatpush1.msra.mxu0 0.0
  %326 = vmatprep.subr.mxu0 0.0
  %327 = vmatpush1.msra.mxu0 0.0
  %328 = vmatprep.subr.mxu0 0.0
  %329 = vmatpush1.msra.mxu0 %v296
  %330 = vmatprep.subr.mxu0 0.0
  %331 = vmatpush2.msra.mxu0 0.0
  %332 = vmatprep.subr.mxu0 0.0
  %333 = vmatpush2.msra.mxu0 0.0
  %334 = vmatprep.subr.mxu0 0.0
  %335 = vmatpush2.msra.mxu0 0.0
  %336 = vmatprep.subr.mxu0 0.0
  %337 = vmatpush2.msra.mxu0 0.0
  %338 = vmatprep.subr.mxu0 0.0
  %339 = vmatpush2.msra.mxu0 0.0
  %340 = vmatprep.subr.mxu0 0.0
  %341 = vmatpush2.msra.mxu0 0.0
  %342 = vmatprep.subr.mxu0 0.0
  %343 = vmatpush2.msra.mxu0 0.0
  %344 = vmatprep.subr.mxu0 0.0
  %345 = vmatpush2.msra.mxu0 0.0
  %346 = vmatprep.subr.mxu0 0.0
  %347 = vmatpush2.msra.mxu0 0.0
  %348 = vmatprep.subr.mxu0 0.0
  %349 = vmatpush2.msra.mxu0 0.0
  %350 = vmatprep.subr.mxu0 0.0
  %351 = vmatpush2.msra.mxu0 0.0
  %352 = vmatprep.subr.mxu0 0.0
  %353 = vmatpush2.msra.mxu0 0.0
  %354 = vmatprep.subr.mxu0 0.0
  %355 = vmatpush2.msra.mxu0 0.0
  %356 = vmatprep.subr.mxu0 0.0
  %357 = vmatpush2.msra.mxu0 0.0
  %358 = vmatprep.subr.mxu0 0.0
  %359 = vmatpush2.msra.mxu0 0.0
  %360 = vmatprep.subr.mxu0 0.0
  %361 = vmatpush2.msra.mxu0 0.0
  %362 = vmatprep.mubr.f32.mxu0 0.0
  %363 = vmatmul.mubr.f32.gmra.mxu0 %v271
  %v364 = vpop.f32.mrf.mxu0
  %v365 = vadd.f32 %v268, %v364
  %v366 = vpop.f32.mrf.mxu0
  %367 = vmatprep.mubr.f32.mxu0 0.0
  %368 = vmatmul.mubr.f32.gmra.mxu0 %v274
  %v369 = vpop.f32.mrf.mxu0
  %v370 = vadd.f32 %v268, %v369
  %v371 = vpop.f32.mrf.mxu0
  %372 = vmatprep.mubr.f32.mxu0 0.0
  %373 = vmatmul.mubr.f32.gmra.mxu0 %v277
  %v374 = vpop.f32.mrf.mxu0
  %v375 = vadd.f32 %v268, %v374
  %v376 = vpop.f32.mrf.mxu0
  %377 = vmatprep.mubr.f32.mxu0 0.0
  %378 = vmatmul.mubr.f32.gmra.mxu0 %v280
  %v379 = vpop.f32.mrf.mxu0
  %v380 = vadd.f32 %v268, %v379
  %v381 = vpop.f32.mrf.mxu0
  %382 = vmatprep.mubr.f32.mxu0 0.0
  %383 = vmatmul.mubr.f32.gmra.mxu0 %v283
  %v384 = vpop.f32.mrf.mxu0
  %v385 = vadd.f32 %v268, %v384
  %v386 = vpop.f32.mrf.mxu0
  %387 = vmatprep.mubr.f32.mxu0 0.0
  %388 = vmatmul.mubr.f32.gmra.mxu0 %v286
  %v389 = vpop.f32.mrf.mxu0
  %v390 = vadd.f32 %v268, %v389
  %v391 = vpop.f32.mrf.mxu0
  %392 = vmatprep.mubr.f32.mxu0 0.0
  %393 = vmatmul.mubr.f32.gmra.mxu0 %v289
  %v394 = vpop.f32.mrf.mxu0
  %v395 = vadd.f32 %v268, %v394
  %v396 = vpop.f32.mrf.mxu0
  %397 = vmatprep.mubr.f32.mxu0 0.0
  %398 = vmatmul.mubr.f32.gmra.mxu0 %v292
  %v399 = vpop.f32.mrf.mxu0
  %v400 = vadd.f32 %v268, %v399
  %v401 = vpop.f32.mrf.mxu0
  %402 = vdwg.mxu0
  %vm403 = vcmask 261120
  %v405 = vsel %vm403, 0.0, 0
  %407 = vmatprep.subr.mxu0 0.0
  %408 = vmatpush1.msra.mxu0 0.0
  %409 = vmatprep.subr.mxu0 0.0
  %410 = vmatpush1.msra.mxu0 0.0
  %411 = vmatprep.subr.mxu0 0.0
  %412 = vmatpush1.msra.mxu0 0.0
  %413 = vmatprep.subr.mxu0 0.0
  %414 = vmatpush1.msra.mxu0 0.0
  %415 = vmatprep.subr.mxu0 0.0
  %416 = vmatpush1.msra.mxu0 0.0
  %417 = vmatprep.subr.mxu0 0.0
  %418 = vmatpush1.msra.mxu0 0.0
  %419 = vmatprep.subr.mxu0 0.0
  %420 = vmatpush1.msra.mxu0 0.0
  %421 = vmatprep.subr.mxu0 0.0
  %422 = vmatpush1.msra.mxu0 0.0
  %423 = vmatprep.subr.mxu0 0.0
  %424 = vmatpush1.msra.mxu0 0.0
  %425 = vmatprep.subr.mxu0 0.0
  %426 = vmatpush1.msra.mxu0 0.0
  %427 = vmatprep.subr.mxu0 0.0
  %428 = vmatpush1.msra.mxu0 0.0
  %429 = vmatprep.subr.mxu0 0.0
  %430 = vmatpush1.msra.mxu0 0.0
  %431 = vmatprep.subr.mxu0 0.0
  %432 = vmatpush1.msra.mxu0 %v262
  %433 = vmatprep.subr.mxu0 0.0
  %434 = vmatpush1.msra.mxu0 %v261
  %435 = vmatprep.subr.mxu0 0.0
  %436 = vmatpush1.msra.mxu0 %v260
  %437 = vmatprep.subr.mxu0 0.0
  %438 = vmatpush1.msra.mxu0 %v259
  %439 = vmatprep.subr.mxu0 0.0
  %440 = vmatpush2.msra.mxu0 0.0
  %441 = vmatprep.subr.mxu0 0.0
  %442 = vmatpush2.msra.mxu0 0.0
  %443 = vmatprep.subr.mxu0 0.0
  %444 = vmatpush2.msra.mxu0 0.0
  %445 = vmatprep.subr.mxu0 0.0
  %446 = vmatpush2.msra.mxu0 0.0
  %447 = vmatprep.subr.mxu0 0.0
  %448 = vmatpush2.msra.mxu0 0.0
  %449 = vmatprep.subr.mxu0 0.0
  %450 = vmatpush2.msra.mxu0 0.0
  %451 = vmatprep.subr.mxu0 0.0
  %452 = vmatpush2.msra.mxu0 0.0
  %453 = vmatprep.subr.mxu0 0.0
  %454 = vmatpush2.msra.mxu0 0.0
  %455 = vmatprep.subr.mxu0 0.0
  %456 = vmatpush2.msra.mxu0 0.0
  %457 = vmatprep.subr.mxu0 0.0
  %458 = vmatpush2.msra.mxu0 0.0
  %459 = vmatprep.subr.mxu0 0.0
  %460 = vmatpush2.msra.mxu0 0.0
  %461 = vmatprep.subr.mxu0 0.0
  %462 = vmatpush2.msra.mxu0 0.0
  %463 = vmatprep.subr.mxu0 0.0
  %464 = vmatpush2.msra.mxu0 0.0
  %465 = vmatprep.subr.mxu0 0.0
  %466 = vmatpush2.msra.mxu0 0.0
  %467 = vmatprep.subr.mxu0 0.0
  %468 = vmatpush2.msra.mxu0 0.0
  %469 = vmatprep.subr.mxu0 0.0
  %470 = vmatpush2.msra.mxu0 0.0
  %471 = vmatprep.mubr.f32.mxu0 0.0
  %472 = vmatmul.mubr.f32.gmra.mxu0 %v405
  %v473 = vpop.f32.mrf.mxu0
  %v474 = vadd.f32 0.0, %v473
  %v475 = vpop.f32.mrf.mxu0
  %476 = vdwg.mxu0
  %v477 = vadd.f32 %v365, %v474
  %v478 = vxor.u32 %v477, 2147483648
  %v479 = vmul.f32 %v478, 1.442695
  %v480 = vpow.pop %v479
  %v481 = vadd.f32 %v480, 1.0
  %v482 = vrcp.pop %v481
  %v483 = vmul.f32 1.0, %v482
  %v484 = vtanh.pop %v477
  %v485 = vmul.f32 %v483, 0.0
  %487 = vrot.lane.b32.xlu0 %v484, 64
  %v488 = vpop.permute.xlu0 %487
  %v490 = vmul.f32 %v483, %v488
  %492 = vrot.lane.b32.xlu0 %v490, 32
  %v493 = vpop.permute.xlu0 %492
  %v495 = vadd.f32 %v485, %v493
  %v496 = vtanh.pop %v495
  %498 = vrot.lane.b32.xlu0 %v496, 64
  %v499 = vpop.permute.xlu0 %498
  %v501 = vmul.f32 %v483, %v499
  %503 = vrot.lane.b32.xlu0 %v501, 32
  %v504 = vpop.permute.xlu0 %503
  %v505 = vsel %vm403, %v504, 0
  %507 = vmatprep.subr.mxu0 0.0
  %508 = vmatpush1.msra.mxu0 0.0
  %509 = vmatprep.subr.mxu0 0.0
  %510 = vmatpush1.msra.mxu0 0.0
  %511 = vmatprep.subr.mxu0 0.0
  %512 = vmatpush1.msra.mxu0 0.0
  %513 = vmatprep.subr.mxu0 0.0
  %514 = vmatpush1.msra.mxu0 0.0
  %515 = vmatprep.subr.mxu0 0.0
  %516 = vmatpush1.msra.mxu0 0.0
  %517 = vmatprep.subr.mxu0 0.0
  %518 = vmatpush1.msra.mxu0 0.0
  %519 = vmatprep.subr.mxu0 0.0
  %520 = vmatpush1.msra.mxu0 0.0
  %521 = vmatprep.subr.mxu0 0.0
  %522 = vmatpush1.msra.mxu0 0.0
  %523 = vmatprep.subr.mxu0 0.0
  %524 = vmatpush1.msra.mxu0 0.0
  %525 = vmatprep.subr.mxu0 0.0
  %526 = vmatpush1.msra.mxu0 0.0
  %527 = vmatprep.subr.mxu0 0.0
  %528 = vmatpush1.msra.mxu0 0.0
  %529 = vmatprep.subr.mxu0 0.0
  %530 = vmatpush1.msra.mxu0 0.0
  %531 = vmatprep.subr.mxu0 0.0
  %532 = vmatpush1.msra.mxu0 %v262
  %533 = vmatprep.subr.mxu0 0.0
  %534 = vmatpush1.msra.mxu0 %v261
  %535 = vmatprep.subr.mxu0 0.0
  %536 = vmatpush1.msra.mxu0 %v260
  %537 = vmatprep.subr.mxu0 0.0
  %538 = vmatpush1.msra.mxu0 %v259
  %539 = vmatprep.subr.mxu0 0.0
  %540 = vmatpush2.msra.mxu0 0.0
  %541 = vmatprep.subr.mxu0 0.0
  %542 = vmatpush2.msra.mxu0 0.0
  %543 = vmatprep.subr.mxu0 0.0
  %544 = vmatpush2.msra.mxu0 0.0
  %545 = vmatprep.subr.mxu0 0.0
  %546 = vmatpush2.msra.mxu0 0.0
  %547 = vmatprep.subr.mxu0 0.0
  %548 = vmatpush2.msra.mxu0 0.0
  %549 = vmatprep.subr.mxu0 0.0
  %550 = vmatpush2.msra.mxu0 0.0
  %551 = vmatprep.subr.mxu0 0.0
  %552 = vmatpush2.msra.mxu0 0.0
  %553 = vmatprep.subr.mxu0 0.0
  %554 = vmatpush2.msra.mxu0 0.0
  %555 = vmatprep.subr.mxu0 0.0
  %556 = vmatpush2.msra.mxu0 0.0
  %557 = vmatprep.subr.mxu0 0.0
  %558 = vmatpush2.msra.mxu0 0.0
  %559 = vmatprep.subr.mxu0 0.0
  %560 = vmatpush2.msra.mxu0 0.0
  %561 = vmatprep.subr.mxu0 0.0
  %562 = vmatpush2.msra.mxu0 0.0
  %563 = vmatprep.subr.mxu0 0.0
  %564 = vmatpush2.msra.mxu0 0.0
  %565 = vmatprep.subr.mxu0 0.0
  %566 = vmatpush2.msra.mxu0 0.0
  %567 = vmatprep.subr.mxu0 0.0
  %568 = vmatpush2.msra.mxu0 0.0
  %569 = vmatprep.subr.mxu0 0.0
  %570 = vmatpush2.msra.mxu0 0.0
  %571 = vmatprep.mubr.f32.mxu0 0.0
  %572 = vmatmul.mubr.f32.gmra.mxu0 %v505
  %v573 = vpop.f32.mrf.mxu0
  %v574 = vadd.f32 0.0, %v573
  %v575 = vpop.f32.mrf.mxu0
  %576 = vdwg.mxu0
  %v577 = vadd.f32 %v370, %v574
  %v578 = vxor.u32 %v577, 2147483648
  %v579 = vmul.f32 %v578, 1.442695
  %v580 = vpow.pop %v579
  %v581 = vadd.f32 %v580, 1.0
  %v582 = vrcp.pop %v581
  %v583 = vmul.f32 1.0, %v582
  %v584 = vtanh.pop %v577
  %v585 = vmul.f32 %v583, %v495
  %587 = vrot.lane.b32.xlu0 %v584, 64
  %v588 = vpop.permute.xlu0 %587
  %v590 = vmul.f32 %v583, %v588
  %592 = vrot.lane.b32.xlu0 %v590, 32
  %v593 = vpop.permute.xlu0 %592
  %v595 = vadd.f32 %v585, %v593
  %v596 = vtanh.pop %v595
  %598 = vrot.lane.b32.xlu0 %v596, 64
  %v599 = vpop.permute.xlu0 %598
  %v601 = vmul.f32 %v583, %v599
  %603 = vrot.lane.b32.xlu0 %v601, 32
  %v604 = vpop.permute.xlu0 %603
  %v605 = vsel %vm403, %v604, 0
  %607 = vmatprep.subr.mxu0 0.0
  %608 = vmatpush1.msra.mxu0 0.0
  %609 = vmatprep.subr.mxu0 0.0
  %610 = vmatpush1.msra.mxu0 0.0
  %611 = vmatprep.subr.mxu0 0.0
  %612 = vmatpush1.msra.mxu0 0.0
  %613 = vmatprep.subr.mxu0 0.0
  %614 = vmatpush1.msra.mxu0 0.0
  %615 = vmatprep.subr.mxu0 0.0
  %616 = vmatpush1.msra.mxu0 0.0
  %617 = vmatprep.subr.mxu0 0.0
  %618 = vmatpush1.msra.mxu0 0.0
  %619 = vmatprep.subr.mxu0 0.0
  %620 = vmatpush1.msra.mxu0 0.0
  %621 = vmatprep.subr.mxu0 0.0
  %622 = vmatpush1.msra.mxu0 0.0
  %623 = vmatprep.subr.mxu0 0.0
  %624 = vmatpush1.msra.mxu0 0.0
  %625 = vmatprep.subr.mxu0 0.0
  %626 = vmatpush1.msra.mxu0 0.0
  %627 = vmatprep.subr.mxu0 0.0
  %628 = vmatpush1.msra.mxu0 0.0
  %629 = vmatprep.subr.mxu0 0.0
  %630 = vmatpush1.msra.mxu0 0.0
  %631 = vmatprep.subr.mxu0 0.0
  %632 = vmatpush1.msra.mxu0 %v262
  %633 = vmatprep.subr.mxu0 0.0
  %634 = vmatpush1.msra.mxu0 %v261
  %635 = vmatprep.subr.mxu0 0.0
  %636 = vmatpush1.msra.mxu0 %v260
  %637 = vmatprep.subr.mxu0 0.0
  %638 = vmatpush1.msra.mxu0 %v259
  %639 = vmatprep.subr.mxu0 0.0
  %640 = vmatpush2.msra.mxu0 0.0
  %641 = vmatprep.subr.mxu0 0.0
  %642 = vmatpush2.msra.mxu0 0.0
  %643 = vmatprep.subr.mxu0 0.0
  %644 = vmatpush2.msra.mxu0 0.0
  %645 = vmatprep.subr.mxu0 0.0
  %646 = vmatpush2.msra.mxu0 0.0
  %647 = vmatprep.subr.mxu0 0.0
  %648 = vmatpush2.msra.mxu0 0.0
  %649 = vmatprep.subr.mxu0 0.0
  %650 = vmatpush2.msra.mxu0 0.0
  %651 = vmatprep.subr.mxu0 0.0
  %652 = vmatpush2.msra.mxu0 0.0
  %653 = vmatprep.subr.mxu0 0.0
  %654 = vmatpush2.msra.mxu0 0.0
  %655 = vmatprep.subr.mxu0 0.0
  %656 = vmatpush2.msra.mxu0 0.0
  %657 = vmatprep.subr.mxu0 0.0
  %658 = vmatpush2.msra.mxu0 0.0
  %659 = vmatprep.subr.mxu0 0.0
  %660 = vmatpush2.msra.mxu0 0.0
  %661 = vmatprep.subr.mxu0 0.0
  %662 = vmatpush2.msra.mxu0 0.0
  %663 = vmatprep.subr.mxu0 0.0
  %664 = vmatpush2.msra.mxu0 0.0
  %665 = vmatprep.subr.mxu0 0.0
  %666 = vmatpush2.msra.mxu0 0.0
  %667 = vmatprep.subr.mxu0 0.0
  %668 = vmatpush2.msra.mxu0 0.0
  %669 = vmatprep.subr.mxu0 0.0
  %670 = vmatpush2.msra.mxu0 0.0
  %671 = vmatprep.mubr.f32.mxu0 0.0
  %672 = vmatmul.mubr.f32.gmra.mxu0 %v605
  %v673 = vpop.f32.mrf.mxu0
  %v674 = vadd.f32 0.0, %v673
  %v675 = vpop.f32.mrf.mxu0
  %676 = vdwg.mxu0
  %v677 = vadd.f32 %v375, %v674
  %v678 = vxor.u32 %v677, 2147483648
  %v679 = vmul.f32 %v678, 1.442695
  %v680 = vpow.pop %v679
  %v681 = vadd.f32 %v680, 1.0
  %v682 = vrcp.pop %v681
  %v683 = vmul.f32 1.0, %v682
  %v684 = vtanh.pop %v677
  %v685 = vmul.f32 %v683, %v595
  %687 = vrot.lane.b32.xlu0 %v684, 64
  %v688 = vpop.permute.xlu0 %687
  %v690 = vmul.f32 %v683, %v688
  %692 = vrot.lane.b32.xlu0 %v690, 32
  %v693 = vpop.permute.xlu0 %692
  %v695 = vadd.f32 %v685, %v693
  %v696 = vtanh.pop %v695
  %698 = vrot.lane.b32.xlu0 %v696, 64
  %v699 = vpop.permute.xlu0 %698
  %v701 = vmul.f32 %v683, %v699
  %703 = vrot.lane.b32.xlu0 %v701, 32
  %v704 = vpop.permute.xlu0 %703
  %v705 = vsel %vm403, %v704, 0
  %707 = vmatprep.subr.mxu0 0.0
  %708 = vmatpush1.msra.mxu0 0.0
  %709 = vmatprep.subr.mxu0 0.0
  %710 = vmatpush1.msra.mxu0 0.0
  %711 = vmatprep.subr.mxu0 0.0
  %712 = vmatpush1.msra.mxu0 0.0
  %713 = vmatprep.subr.mxu0 0.0
  %714 = vmatpush1.msra.mxu0 0.0
  %715 = vmatprep.subr.mxu0 0.0
  %716 = vmatpush1.msra.mxu0 0.0
  %717 = vmatprep.subr.mxu0 0.0
  %718 = vmatpush1.msra.mxu0 0.0
  %719 = vmatprep.subr.mxu0 0.0
  %720 = vmatpush1.msra.mxu0 0.0
  %721 = vmatprep.subr.mxu0 0.0
  %722 = vmatpush1.msra.mxu0 0.0
  %723 = vmatprep.subr.mxu0 0.0
  %724 = vmatpush1.msra.mxu0 0.0
  %725 = vmatprep.subr.mxu0 0.0
  %726 = vmatpush1.msra.mxu0 0.0
  %727 = vmatprep.subr.mxu0 0.0
  %728 = vmatpush1.msra.mxu0 0.0
  %729 = vmatprep.subr.mxu0 0.0
  %730 = vmatpush1.msra.mxu0 0.0
  %731 = vmatprep.subr.mxu0 0.0
  %732 = vmatpush1.msra.mxu0 %v262
  %733 = vmatprep.subr.mxu0 0.0
  %734 = vmatpush1.msra.mxu0 %v261
  %735 = vmatprep.subr.mxu0 0.0
  %736 = vmatpush1.msra.mxu0 %v260
  %737 = vmatprep.subr.mxu0 0.0
  %738 = vmatpush1.msra.mxu0 %v259
  %739 = vmatprep.subr.mxu0 0.0
  %740 = vmatpush2.msra.mxu0 0.0
  %741 = vmatprep.subr.mxu0 0.0
  %742 = vmatpush2.msra.mxu0 0.0
  %743 = vmatprep.subr.mxu0 0.0
  %744 = vmatpush2.msra.mxu0 0.0
  %745 = vmatprep.subr.mxu0 0.0
  %746 = vmatpush2.msra.mxu0 0.0
  %747 = vmatprep.subr.mxu0 0.0
  %748 = vmatpush2.msra.mxu0 0.0
  %749 = vmatprep.subr.mxu0 0.0
  %750 = vmatpush2.msra.mxu0 0.0
  %751 = vmatprep.subr.mxu0 0.0
  %752 = vmatpush2.msra.mxu0 0.0
  %753 = vmatprep.subr.mxu0 0.0
  %754 = vmatpush2.msra.mxu0 0.0
  %755 = vmatprep.subr.mxu0 0.0
  %756 = vmatpush2.msra.mxu0 0.0
  %757 = vmatprep.subr.mxu0 0.0
  %758 = vmatpush2.msra.mxu0 0.0
  %759 = vmatprep.subr.mxu0 0.0
  %760 = vmatpush2.msra.mxu0 0.0
  %761 = vmatprep.subr.mxu0 0.0
  %762 = vmatpush2.msra.mxu0 0.0
  %763 = vmatprep.subr.mxu0 0.0
  %764 = vmatpush2.msra.mxu0 0.0
  %765 = vmatprep.subr.mxu0 0.0
  %766 = vmatpush2.msra.mxu0 0.0
  %767 = vmatprep.subr.mxu0 0.0
  %768 = vmatpush2.msra.mxu0 0.0
  %769 = vmatprep.subr.mxu0 0.0
  %770 = vmatpush2.msra.mxu0 0.0
  %771 = vmatprep.mubr.f32.mxu0 0.0
  %772 = vmatmul.mubr.f32.gmra.mxu0 %v705
  %v773 = vpop.f32.mrf.mxu0
  %v774 = vadd.f32 0.0, %v773
  %v775 = vpop.f32.mrf.mxu0
  %776 = vdwg.mxu0
  %v777 = vadd.f32 %v380, %v774
  %v778 = vxor.u32 %v777, 2147483648
  %v779 = vmul.f32 %v778, 1.442695
  %v780 = vpow.pop %v779
  %v781 = vadd.f32 %v780, 1.0
  %v782 = vrcp.pop %v781
  %v783 = vmul.f32 1.0, %v782
  %v784 = vtanh.pop %v777
  %v785 = vmul.f32 %v783, %v695
  %787 = vrot.lane.b32.xlu0 %v784, 64
  %v788 = vpop.permute.xlu0 %787
  %v790 = vmul.f32 %v783, %v788
  %792 = vrot.lane.b32.xlu0 %v790, 32
  %v793 = vpop.permute.xlu0 %792
  %v795 = vadd.f32 %v785, %v793
  %v796 = vtanh.pop %v795
  %798 = vrot.lane.b32.xlu0 %v796, 64
  %v799 = vpop.permute.xlu0 %798
  %v801 = vmul.f32 %v783, %v799
  %803 = vrot.lane.b32.xlu0 %v801, 32
  %v804 = vpop.permute.xlu0 %803
  %v805 = vsel %vm403, %v804, 0
  %807 = vmatprep.subr.mxu0 0.0
  %808 = vmatpush1.msra.mxu0 0.0
  %809 = vmatprep.subr.mxu0 0.0
  %810 = vmatpush1.msra.mxu0 0.0
  %811 = vmatprep.subr.mxu0 0.0
  %812 = vmatpush1.msra.mxu0 0.0
  %813 = vmatprep.subr.mxu0 0.0
  %814 = vmatpush1.msra.mxu0 0.0
  %815 = vmatprep.subr.mxu0 0.0
  %816 = vmatpush1.msra.mxu0 0.0
  %817 = vmatprep.subr.mxu0 0.0
  %818 = vmatpush1.msra.mxu0 0.0
  %819 = vmatprep.subr.mxu0 0.0
  %820 = vmatpush1.msra.mxu0 0.0
  %821 = vmatprep.subr.mxu0 0.0
  %822 = vmatpush1.msra.mxu0 0.0
  %823 = vmatprep.subr.mxu0 0.0
  %824 = vmatpush1.msra.mxu0 0.0
  %825 = vmatprep.subr.mxu0 0.0
  %826 = vmatpush1.msra.mxu0 0.0
  %827 = vmatprep.subr.mxu0 0.0
  %828 = vmatpush1.msra.mxu0 0.0
  %829 = vmatprep.subr.mxu0 0.0
  %830 = vmatpush1.msra.mxu0 0.0
  %831 = vmatprep.subr.mxu0 0.0
  %832 = vmatpush1.msra.mxu0 %v262
  %833 = vmatprep.subr.mxu0 0.0
  %834 = vmatpush1.msra.mxu0 %v261
  %835 = vmatprep.subr.mxu0 0.0
  %836 = vmatpush1.msra.mxu0 %v260
  %837 = vmatprep.subr.mxu0 0.0
  %838 = vmatpush1.msra.mxu0 %v259
  %839 = vmatprep.subr.mxu0 0.0
  %840 = vmatpush2.msra.mxu0 0.0
  %841 = vmatprep.subr.mxu0 0.0
  %842 = vmatpush2.msra.mxu0 0.0
  %843 = vmatprep.subr.mxu0 0.0
  %844 = vmatpush2.msra.mxu0 0.0
  %845 = vmatprep.subr.mxu0 0.0
  %846 = vmatpush2.msra.mxu0 0.0
  %847 = vmatprep.subr.mxu0 0.0
  %848 = vmatpush2.msra.mxu0 0.0
  %849 = vmatprep.subr.mxu0 0.0
  %850 = vmatpush2.msra.mxu0 0.0
  %851 = vmatprep.subr.mxu0 0.0
  %852 = vmatpush2.msra.mxu0 0.0
  %853 = vmatprep.subr.mxu0 0.0
  %854 = vmatpush2.msra.mxu0 0.0
  %855 = vmatprep.subr.mxu0 0.0
  %856 = vmatpush2.msra.mxu0 0.0
  %857 = vmatprep.subr.mxu0 0.0
  %858 = vmatpush2.msra.mxu0 0.0
  %859 = vmatprep.subr.mxu0 0.0
  %860 = vmatpush2.msra.mxu0 0.0
  %861 = vmatprep.subr.mxu0 0.0
  %862 = vmatpush2.msra.mxu0 0.0
  %863 = vmatprep.subr.mxu0 0.0
  %864 = vmatpush2.msra.mxu0 0.0
  %865 = vmatprep.subr.mxu0 0.0
  %866 = vmatpush2.msra.mxu0 0.0
  %867 = vmatprep.subr.mxu0 0.0
  %868 = vmatpush2.msra.mxu0 0.0
  %869 = vmatprep.subr.mxu0 0.0
  %870 = vmatpush2.msra.mxu0 0.0
  %871 = vmatprep.mubr.f32.mxu0 0.0
  %872 = vmatmul.mubr.f32.gmra.mxu0 %v805
  %v873 = vpop.f32.mrf.mxu0
  %v874 = vadd.f32 0.0, %v873
  %v875 = vpop.f32.mrf.mxu0
  %876 = vdwg.mxu0
  %v877 = vadd.f32 %v385, %v874
  %v878 = vxor.u32 %v877, 2147483648
  %v879 = vmul.f32 %v878, 1.442695
  %v880 = vpow.pop %v879
  %v881 = vadd.f32 %v880, 1.0
  %v882 = vrcp.pop %v881
  %v883 = vmul.f32 1.0, %v882
  %v884 = vtanh.pop %v877
  %v885 = vmul.f32 %v883, %v795
  %887 = vrot.lane.b32.xlu0 %v884, 64
  %v888 = vpop.permute.xlu0 %887
  %v890 = vmul.f32 %v883, %v888
  %892 = vrot.lane.b32.xlu0 %v890, 32
  %v893 = vpop.permute.xlu0 %892
  %v895 = vadd.f32 %v885, %v893
  %v896 = vtanh.pop %v895
  %898 = vrot.lane.b32.xlu0 %v896, 64
  %v899 = vpop.permute.xlu0 %898
  %v901 = vmul.f32 %v883, %v899
  %903 = vrot.lane.b32.xlu0 %v901, 32
  %v904 = vpop.permute.xlu0 %903
  %v905 = vsel %vm403, %v904, 0
  %907 = vmatprep.subr.mxu0 0.0
  %908 = vmatpush1.msra.mxu0 0.0
  %909 = vmatprep.subr.mxu0 0.0
  %910 = vmatpush1.msra.mxu0 0.0
  %911 = vmatprep.subr.mxu0 0.0
  %912 = vmatpush1.msra.mxu0 0.0
  %913 = vmatprep.subr.mxu0 0.0
  %914 = vmatpush1.msra.mxu0 0.0
  %915 = vmatprep.subr.mxu0 0.0
  %916 = vmatpush1.msra.mxu0 0.0
  %917 = vmatprep.subr.mxu0 0.0
  %918 = vmatpush1.msra.mxu0 0.0
  %919 = vmatprep.subr.mxu0 0.0
  %920 = vmatpush1.msra.mxu0 0.0
  %921 = vmatprep.subr.mxu0 0.0
  %922 = vmatpush1.msra.mxu0 0.0
  %923 = vmatprep.subr.mxu0 0.0
  %924 = vmatpush1.msra.mxu0 0.0
  %925 = vmatprep.subr.mxu0 0.0
  %926 = vmatpush1.msra.mxu0 0.0
  %927 = vmatprep.subr.mxu0 0.0
  %928 = vmatpush1.msra.mxu0 0.0
  %929 = vmatprep.subr.mxu0 0.0
  %930 = vmatpush1.msra.mxu0 0.0
  %931 = vmatprep.subr.mxu0 0.0
  %932 = vmatpush1.msra.mxu0 %v262
  %933 = vmatprep.subr.mxu0 0.0
  %934 = vmatpush1.msra.mxu0 %v261
  %935 = vmatprep.subr.mxu0 0.0
  %936 = vmatpush1.msra.mxu0 %v260
  %937 = vmatprep.subr.mxu0 0.0
  %938 = vmatpush1.msra.mxu0 %v259
  %939 = vmatprep.subr.mxu0 0.0
  %940 = vmatpush2.msra.mxu0 0.0
  %941 = vmatprep.subr.mxu0 0.0
  %942 = vmatpush2.msra.mxu0 0.0
  %943 = vmatprep.subr.mxu0 0.0
  %944 = vmatpush2.msra.mxu0 0.0
  %945 = vmatprep.subr.mxu0 0.0
  %946 = vmatpush2.msra.mxu0 0.0
  %947 = vmatprep.subr.mxu0 0.0
  %948 = vmatpush2.msra.mxu0 0.0
  %949 = vmatprep.subr.mxu0 0.0
  %950 = vmatpush2.msra.mxu0 0.0
  %951 = vmatprep.subr.mxu0 0.0
  %952 = vmatpush2.msra.mxu0 0.0
  %953 = vmatprep.subr.mxu0 0.0
  %954 = vmatpush2.msra.mxu0 0.0
  %955 = vmatprep.subr.mxu0 0.0
  %956 = vmatpush2.msra.mxu0 0.0
  %957 = vmatprep.subr.mxu0 0.0
  %958 = vmatpush2.msra.mxu0 0.0
  %959 = vmatprep.subr.mxu0 0.0
  %960 = vmatpush2.msra.mxu0 0.0
  %961 = vmatprep.subr.mxu0 0.0
  %962 = vmatpush2.msra.mxu0 0.0
  %963 = vmatprep.subr.mxu0 0.0
  %964 = vmatpush2.msra.mxu0 0.0
  %965 = vmatprep.subr.mxu0 0.0
  %966 = vmatpush2.msra.mxu0 0.0
  %967 = vmatprep.subr.mxu0 0.0
  %968 = vmatpush2.msra.mxu0 0.0
  %969 = vmatprep.subr.mxu0 0.0
  %970 = vmatpush2.msra.mxu0 0.0
  %971 = vmatprep.mubr.f32.mxu0 0.0
  %972 = vmatmul.mubr.f32.gmra.mxu0 %v905
  %v973 = vpop.f32.mrf.mxu0
  %v974 = vadd.f32 0.0, %v973
  %v975 = vpop.f32.mrf.mxu0
  %976 = vdwg.mxu0
  %v977 = vadd.f32 %v390, %v974
  %v978 = vxor.u32 %v977, 2147483648
  %v979 = vmul.f32 %v978, 1.442695
  %v980 = vpow.pop %v979
  %v981 = vadd.f32 %v980, 1.0
  %v982 = vrcp.pop %v981
  %v983 = vmul.f32 1.0, %v982
  %v984 = vtanh.pop %v977
  %v985 = vmul.f32 %v983, %v895
  %987 = vrot.lane.b32.xlu0 %v984, 64
  %v988 = vpop.permute.xlu0 %987
  %v990 = vmul.f32 %v983, %v988
  %992 = vrot.lane.b32.xlu0 %v990, 32
  %v993 = vpop.permute.xlu0 %992
  %v995 = vadd.f32 %v985, %v993
  %v996 = vtanh.pop %v995
  %998 = vrot.lane.b32.xlu0 %v996, 64
  %v999 = vpop.permute.xlu0 %998
  %v1001 = vmul.f32 %v983, %v999
  %1003 = vrot.lane.b32.xlu0 %v1001, 32
  %v1004 = vpop.permute.xlu0 %1003
  %v1005 = vsel %vm403, %v1004, 0
  %1007 = vmatprep.subr.mxu0 0.0
  %1008 = vmatpush1.msra.mxu0 0.0
  %1009 = vmatprep.subr.mxu0 0.0
  %1010 = vmatpush1.msra.mxu0 0.0
  %1011 = vmatprep.subr.mxu0 0.0
  %1012 = vmatpush1.msra.mxu0 0.0
  %1013 = vmatprep.subr.mxu0 0.0
  %1014 = vmatpush1.msra.mxu0 0.0
  %1015 = vmatprep.subr.mxu0 0.0
  %1016 = vmatpush1.msra.mxu0 0.0
  %1017 = vmatprep.subr.mxu0 0.0
  %1018 = vmatpush1.msra.mxu0 0.0
  %1019 = vmatprep.subr.mxu0 0.0
  %1020 = vmatpush1.msra.mxu0 0.0
  %1021 = vmatprep.subr.mxu0 0.0
  %1022 = vmatpush1.msra.mxu0 0.0
  %1023 = vmatprep.subr.mxu0 0.0
  %1024 = vmatpush1.msra.mxu0 0.0
  %1025 = vmatprep.subr.mxu0 0.0
  %1026 = vmatpush1.msra.mxu0 0.0
  %1027 = vmatprep.subr.mxu0 0.0
  %1028 = vmatpush1.msra.mxu0 0.0
  %1029 = vmatprep.subr.mxu0 0.0
  %1030 = vmatpush1.msra.mxu0 0.0
  %1031 = vmatprep.subr.mxu0 0.0
  %1032 = vmatpush1.msra.mxu0 %v262
  %1033 = vmatprep.subr.mxu0 0.0
  %1034 = vmatpush1.msra.mxu0 %v261
  %1035 = vmatprep.subr.mxu0 0.0
  %1036 = vmatpush1.msra.mxu0 %v260
  %1037 = vmatprep.subr.mxu0 0.0
  %1038 = vmatpush1.msra.mxu0 %v259
  %1039 = vmatprep.subr.mxu0 0.0
  %1040 = vmatpush2.msra.mxu0 0.0
  %1041 = vmatprep.subr.mxu0 0.0
  %1042 = vmatpush2.msra.mxu0 0.0
  %1043 = vmatprep.subr.mxu0 0.0
  %1044 = vmatpush2.msra.mxu0 0.0
  %1045 = vmatprep.subr.mxu0 0.0
  %1046 = vmatpush2.msra.mxu0 0.0
  %1047 = vmatprep.subr.mxu0 0.0
  %1048 = vmatpush2.msra.mxu0 0.0
  %1049 = vmatprep.subr.mxu0 0.0
  %1050 = vmatpush2.msra.mxu0 0.0
  %1051 = vmatprep.subr.mxu0 0.0
  %1052 = vmatpush2.msra.mxu0 0.0
  %1053 = vmatprep.subr.mxu0 0.0
  %1054 = vmatpush2.msra.mxu0 0.0
  %1055 = vmatprep.subr.mxu0 0.0
  %1056 = vmatpush2.msra.mxu0 0.0
  %1057 = vmatprep.subr.mxu0 0.0
  %1058 = vmatpush2.msra.mxu0 0.0
  %1059 = vmatprep.subr.mxu0 0.0
  %1060 = vmatpush2.msra.mxu0 0.0
  %1061 = vmatprep.subr.mxu0 0.0
  %1062 = vmatpush2.msra.mxu0 0.0
  %1063 = vmatprep.subr.mxu0 0.0
  %1064 = vmatpush2.msra.mxu0 0.0
  %1065 = vmatprep.subr.mxu0 0.0
  %1066 = vmatpush2.msra.mxu0 0.0
  %1067 = vmatprep.subr.mxu0 0.0
  %1068 = vmatpush2.msra.mxu0 0.0
  %1069 = vmatprep.subr.mxu0 0.0
  %1070 = vmatpush2.msra.mxu0 0.0
  %1071 = vmatprep.mubr.f32.mxu0 0.0
  %1072 = vmatmul.mubr.f32.gmra.mxu0 %v1005
  %v1073 = vpop.f32.mrf.mxu0
  %v1074 = vadd.f32 0.0, %v1073
  %v1075 = vpop.f32.mrf.mxu0
  %1076 = vdwg.mxu0
  %v1077 = vadd.f32 %v395, %v1074
  %v1078 = vxor.u32 %v1077, 2147483648
  %v1079 = vmul.f32 %v1078, 1.442695
  %v1080 = vpow.pop %v1079
  %v1081 = vadd.f32 %v1080, 1.0
  %v1082 = vrcp.pop %v1081
  %v1083 = vmul.f32 1.0, %v1082
  %v1084 = vtanh.pop %v1077
  %v1085 = vmul.f32 %v1083, %v995
  %1087 = vrot.lane.b32.xlu0 %v1084, 64
  %v1088 = vpop.permute.xlu0 %1087
  %v1090 = vmul.f32 %v1083, %v1088
  %1092 = vrot.lane.b32.xlu0 %v1090, 32
  %v1093 = vpop.permute.xlu0 %1092
  %v1095 = vadd.f32 %v1085, %v1093
  %v1096 = vtanh.pop %v1095
  %1098 = vrot.lane.b32.xlu0 %v1096, 64
  %v1099 = vpop.permute.xlu0 %1098
  %v1101 = vmul.f32 %v1083, %v1099
  %1103 = vrot.lane.b32.xlu0 %v1101, 32
  %v1104 = vpop.permute.xlu0 %1103
  %v1105 = vsel %vm403, %v1104, 0
  %1107 = vmatprep.subr.mxu0 0.0
  %1108 = vmatpush1.msra.mxu0 0.0
  %1109 = vmatprep.subr.mxu0 0.0
  %1110 = vmatpush1.msra.mxu0 0.0
  %1111 = vmatprep.subr.mxu0 0.0
  %1112 = vmatpush1.msra.mxu0 0.0
  %1113 = vmatprep.subr.mxu0 0.0
  %1114 = vmatpush1.msra.mxu0 0.0
  %1115 = vmatprep.subr.mxu0 0.0
  %1116 = vmatpush1.msra.mxu0 0.0
  %1117 = vmatprep.subr.mxu0 0.0
  %1118 = vmatpush1.msra.mxu0 0.0
  %1119 = vmatprep.subr.mxu0 0.0
  %1120 = vmatpush1.msra.mxu0 0.0
  %1121 = vmatprep.subr.mxu0 0.0
  %1122 = vmatpush1.msra.mxu0 0.0
  %1123 = vmatprep.subr.mxu0 0.0
  %1124 = vmatpush1.msra.mxu0 0.0
  %1125 = vmatprep.subr.mxu0 0.0
  %1126 = vmatpush1.msra.mxu0 0.0
  %1127 = vmatprep.subr.mxu0 0.0
  %1128 = vmatpush1.msra.mxu0 0.0
  %1129 = vmatprep.subr.mxu0 0.0
  %1130 = vmatpush1.msra.mxu0 0.0
  %1131 = vmatprep.subr.mxu0 0.0
  %1132 = vmatpush1.msra.mxu0 %v262
  %1133 = vmatprep.subr.mxu0 0.0
  %1134 = vmatpush1.msra.mxu0 %v261
  %1135 = vmatprep.subr.mxu0 0.0
  %1136 = vmatpush1.msra.mxu0 %v260
  %1137 = vmatprep.subr.mxu0 0.0
  %1138 = vmatpush1.msra.mxu0 %v259
  %1139 = vmatprep.subr.mxu0 0.0
  %1140 = vmatpush2.msra.mxu0 0.0
  %1141 = vmatprep.subr.mxu0 0.0
  %1142 = vmatpush2.msra.mxu0 0.0
  %1143 = vmatprep.subr.mxu0 0.0
  %1144 = vmatpush2.msra.mxu0 0.0
  %1145 = vmatprep.subr.mxu0 0.0
  %1146 = vmatpush2.msra.mxu0 0.0
  %1147 = vmatprep.subr.mxu0 0.0
  %1148 = vmatpush2.msra.mxu0 0.0
  %1149 = vmatprep.subr.mxu0 0.0
  %1150 = vmatpush2.msra.mxu0 0.0
  %1151 = vmatprep.subr.mxu0 0.0
  %1152 = vmatpush2.msra.mxu0 0.0
  %1153 = vmatprep.subr.mxu0 0.0
  %1154 = vmatpush2.msra.mxu0 0.0
  %1155 = vmatprep.subr.mxu0 0.0
  %1156 = vmatpush2.msra.mxu0 0.0
  %1157 = vmatprep.subr.mxu0 0.0
  %1158 = vmatpush2.msra.mxu0 0.0
  %1159 = vmatprep.subr.mxu0 0.0
  %1160 = vmatpush2.msra.mxu0 0.0
  %1161 = vmatprep.subr.mxu0 0.0
  %1162 = vmatpush2.msra.mxu0 0.0
  %1163 = vmatprep.subr.mxu0 0.0
  %1164 = vmatpush2.msra.mxu0 0.0
  %1165 = vmatprep.subr.mxu0 0.0
  %1166 = vmatpush2.msra.mxu0 0.0
  %1167 = vmatprep.subr.mxu0 0.0
  %1168 = vmatpush2.msra.mxu0 0.0
  %1169 = vmatprep.subr.mxu0 0.0
  %1170 = vmatpush2.msra.mxu0 0.0
  %1171 = vmatprep.mubr.f32.mxu0 0.0
  %1172 = vmatmul.mubr.f32.gmra.mxu0 %v1105
  %v1173 = vpop.f32.mrf.mxu0
  %v1174 = vadd.f32 0.0, %v1173
  %v1175 = vpop.f32.mrf.mxu0
  %1176 = vdwg.mxu0
  %v1177 = vadd.f32 %v400, %v1174
  %v1178 = vxor.u32 %v1177, 2147483648
  %v1179 = vmul.f32 %v1178, 1.442695
  %v1180 = vpow.pop %v1179
  %v1181 = vadd.f32 %v1180, 1.0
  %v1182 = vrcp.pop %v1181
  %v1183 = vmul.f32 1.0, %v1182
  %v1184 = vtanh.pop %v1177
  %v1185 = vmul.f32 %v1183, %v1095
  %1187 = vrot.lane.b32.xlu0 %v1184, 64
  %v1188 = vpop.permute.xlu0 %1187
  %v1190 = vmul.f32 %v1183, %v1188
  %1192 = vrot.lane.b32.xlu0 %v1190, 32
  %v1193 = vpop.permute.xlu0 %1192
  %v1195 = vadd.f32 %v1185, %v1193
  %v1196 = vtanh.pop %v1195
  %1198 = vrot.lane.b32.xlu0 %v1196, 64
  %v1199 = vpop.permute.xlu0 %1198
  %v1201 = vmul.f32 %v1183, %v1199
  %1203 = vrot.lane.b32.xlu0 %v1201, 32
  %v1204 = vpop.permute.xlu0 %1203
  %v1205 = vsel %vm403, %v1204, 0
  %1207 = vmatprep.subr.mxu0 0.0
  %1208 = vmatpush1.msra.mxu0 0.0
  %1209 = vmatprep.subr.mxu0 0.0
  %1210 = vmatpush1.msra.mxu0 0.0
  %1211 = vmatprep.subr.mxu0 0.0
  %1212 = vmatpush1.msra.mxu0 0.0
  %1213 = vmatprep.subr.mxu0 0.0
  %1214 = vmatpush1.msra.mxu0 0.0
  %1215 = vmatprep.subr.mxu0 0.0
  %1216 = vmatpush1.msra.mxu0 0.0
  %1217 = vmatprep.subr.mxu0 0.0
  %1218 = vmatpush1.msra.mxu0 0.0
  %1219 = vmatprep.subr.mxu0 0.0
  %1220 = vmatpush1.msra.mxu0 0.0
  %1221 = vmatprep.subr.mxu0 0.0
  %1222 = vmatpush1.msra.mxu0 0.0
  %1223 = vmatprep.subr.mxu0 0.0
  %1224 = vmatpush1.msra.mxu0 0.0
  %1225 = vmatprep.subr.mxu0 0.0
  %1226 = vmatpush1.msra.mxu0 0.0
  %1227 = vmatprep.subr.mxu0 0.0
  %1228 = vmatpush1.msra.mxu0 0.0
  %1229 = vmatprep.subr.mxu0 0.0
  %1230 = vmatpush1.msra.mxu0 0.0
  %1231 = vmatprep.subr.mxu0 0.0
  %1232 = vmatpush1.msra.mxu0 %v262
  %1233 = vmatprep.subr.mxu0 0.0
  %1234 = vmatpush1.msra.mxu0 %v261
  %1235 = vmatprep.subr.mxu0 0.0
  %1236 = vmatpush1.msra.mxu0 %v260
  %1237 = vmatprep.subr.mxu0 0.0
  %1238 = vmatpush1.msra.mxu0 %v259
  %1239 = vmatprep.subr.mxu0 0.0
  %1240 = vmatpush2.msra.mxu0 0.0
  %1241 = vmatprep.subr.mxu0 0.0
  %1242 = vmatpush2.msra.mxu0 0.0
  %1243 = vmatprep.subr.mxu0 0.0
  %1244 = vmatpush2.msra.mxu0 0.0
  %1245 = vmatprep.subr.mxu0 0.0
  %1246 = vmatpush2.msra.mxu0 0.0
  %1247 = vmatprep.subr.mxu0 0.0
  %1248 = vmatpush2.msra.mxu0 0.0
  %1249 = vmatprep.subr.mxu0 0.0
  %1250 = vmatpush2.msra.mxu0 0.0
  %1251 = vmatprep.subr.mxu0 0.0
  %1252 = vmatpush2.msra.mxu0 0.0
  %1253 = vmatprep.subr.mxu0 0.0
  %1254 = vmatpush2.msra.mxu0 0.0
  %1255 = vmatprep.subr.mxu0 0.0
  %1256 = vmatpush2.msra.mxu0 0.0
  %1257 = vmatprep.subr.mxu0 0.0
  %1258 = vmatpush2.msra.mxu0 0.0
  %1259 = vmatprep.subr.mxu0 0.0
  %1260 = vmatpush2.msra.mxu0 0.0
  %1261 = vmatprep.subr.mxu0 0.0
  %1262 = vmatpush2.msra.mxu0 0.0
  %1263 = vmatprep.subr.mxu0 0.0
  %1264 = vmatpush2.msra.mxu0 0.0
  %1265 = vmatprep.subr.mxu0 0.0
  %1266 = vmatpush2.msra.mxu0 0.0
  %1267 = vmatprep.subr.mxu0 0.0
  %1268 = vmatpush2.msra.mxu0 0.0
  %1269 = vmatprep.subr.mxu0 0.0
  %1270 = vmatpush2.msra.mxu0 0.0
  %1271 = vmatprep.mubr.f32.mxu0 0.0
  %1272 = vmatmul.mubr.f32.gmra.mxu0 %v1205
  %v1273 = vpop.f32.mrf.mxu0
  %v1274 = vadd.f32 0.0, %v1273
  %v1275 = vpop.f32.mrf.mxu0
  %1276 = vdwg.mxu0
  %v1277 = vadd.f32 %v365, %v1274
  %v1278 = vxor.u32 %v1277, 2147483648
  %v1279 = vmul.f32 %v1278, 1.442695
  %v1280 = vpow.pop %v1279
  %v1281 = vadd.f32 %v1280, 1.0
  %v1282 = vrcp.pop %v1281
  %v1283 = vmul.f32 1.0, %v1282
  %v1284 = vtanh.pop %v1277
  %v1285 = vmul.f32 %v1283, %v1195
  %1287 = vrot.lane.b32.xlu0 %v1284, 64
  %v1288 = vpop.permute.xlu0 %1287
  %v1290 = vmul.f32 %v1283, %v1288
  %1292 = vrot.lane.b32.xlu0 %v1290, 32
  %v1293 = vpop.permute.xlu0 %1292
  %v1295 = vadd.f32 %v1285, %v1293
  %v1296 = vtanh.pop %v1295
  %1298 = vrot.lane.b32.xlu0 %v1296, 64
  %v1299 = vpop.permute.xlu0 %1298
  %v1301 = vmul.f32 %v1283, %v1299
  %1303 = vrot.lane.b32.xlu0 %v1301, 32
  %v1304 = vpop.permute.xlu0 %1303
  %v1305 = vsel %vm403, %v1304, 0
  %1307 = vmatprep.subr.mxu0 0.0
  %1308 = vmatpush1.msra.mxu0 0.0
  %1309 = vmatprep.subr.mxu0 0.0
  %1310 = vmatpush1.msra.mxu0 0.0
  %1311 = vmatprep.subr.mxu0 0.0
  %1312 = vmatpush1.msra.mxu0 0.0
  %1313 = vmatprep.subr.mxu0 0.0
  %1314 = vmatpush1.msra.mxu0 0.0
  %1315 = vmatprep.subr.mxu0 0.0
  %1316 = vmatpush1.msra.mxu0 0.0
  %1317 = vmatprep.subr.mxu0 0.0
  %1318 = vmatpush1.msra.mxu0 0.0
  %1319 = vmatprep.subr.mxu0 0.0
  %1320 = vmatpush1.msra.mxu0 0.0
  %1321 = vmatprep.subr.mxu0 0.0
  %1322 = vmatpush1.msra.mxu0 0.0
  %1323 = vmatprep.subr.mxu0 0.0
  %1324 = vmatpush1.msra.mxu0 0.0
  %1325 = vmatprep.subr.mxu0 0.0
  %1326 = vmatpush1.msra.mxu0 0.0
  %1327 = vmatprep.subr.mxu0 0.0
  %1328 = vmatpush1.msra.mxu0 0.0
  %1329 = vmatprep.subr.mxu0 0.0
  %1330 = vmatpush1.msra.mxu0 0.0
  %1331 = vmatprep.subr.mxu0 0.0
  %1332 = vmatpush1.msra.mxu0 %v262
  %1333 = vmatprep.subr.mxu0 0.0
  %1334 = vmatpush1.msra.mxu0 %v261
  %1335 = vmatprep.subr.mxu0 0.0
  %1336 = vmatpush1.msra.mxu0 %v260
  %1337 = vmatprep.subr.mxu0 0.0
  %1338 = vmatpush1.msra.mxu0 %v259
  %1339 = vmatprep.subr.mxu0 0.0
  %1340 = vmatpush2.msra.mxu0 0.0
  %1341 = vmatprep.subr.mxu0 0.0
  %1342 = vmatpush2.msra.mxu0 0.0
  %1343 = vmatprep.subr.mxu0 0.0
  %1344 = vmatpush2.msra.mxu0 0.0
  %1345 = vmatprep.subr.mxu0 0.0
  %1346 = vmatpush2.msra.mxu0 0.0
  %1347 = vmatprep.subr.mxu0 0.0
  %1348 = vmatpush2.msra.mxu0 0.0
  %1349 = vmatprep.subr.mxu0 0.0
  %1350 = vmatpush2.msra.mxu0 0.0
  %1351 = vmatprep.subr.mxu0 0.0
  %1352 = vmatpush2.msra.mxu0 0.0
  %1353 = vmatprep.subr.mxu0 0.0
  %1354 = vmatpush2.msra.mxu0 0.0
  %1355 = vmatprep.subr.mxu0 0.0
  %1356 = vmatpush2.msra.mxu0 0.0
  %1357 = vmatprep.subr.mxu0 0.0
  %1358 = vmatpush2.msra.mxu0 0.0
  %1359 = vmatprep.subr.mxu0 0.0
  %1360 = vmatpush2.msra.mxu0 0.0
  %1361 = vmatprep.subr.mxu0 0.0
  %1362 = vmatpush2.msra.mxu0 0.0
  %1363 = vmatprep.subr.mxu0 0.0
  %1364 = vmatpush2.msra.mxu0 0.0
  %1365 = vmatprep.subr.mxu0 0.0
  %1366 = vmatpush2.msra.mxu0 0.0
  %1367 = vmatprep.subr.mxu0 0.0
  %1368 = vmatpush2.msra.mxu0 0.0
  %1369 = vmatprep.subr.mxu0 0.0
  %1370 = vmatpush2.msra.mxu0 0.0
  %1371 = vmatprep.mubr.f32.mxu0 0.0
  %1372 = vmatmul.mubr.f32.gmra.mxu0 %v1305
  %v1373 = vpop.f32.mrf.mxu0
  %v1374 = vadd.f32 0.0, %v1373
  %v1375 = vpop.f32.mrf.mxu0
  %1376 = vdwg.mxu0
  %v1377 = vadd.f32 %v370, %v1374
  %v1378 = vxor.u32 %v1377, 2147483648
  %v1379 = vmul.f32 %v1378, 1.442695
  %v1380 = vpow.pop %v1379
  %v1381 = vadd.f32 %v1380, 1.0
  %v1382 = vrcp.pop %v1381
  %v1383 = vmul.f32 1.0, %v1382
  %v1384 = vtanh.pop %v1377
  %v1385 = vmul.f32 %v1383, %v1295
  %1387 = vrot.lane.b32.xlu0 %v1384, 64
  %v1388 = vpop.permute.xlu0 %1387
  %v1390 = vmul.f32 %v1383, %v1388
  %1392 = vrot.lane.b32.xlu0 %v1390, 32
  %v1393 = vpop.permute.xlu0 %1392
  %v1395 = vadd.f32 %v1385, %v1393
  %v1396 = vtanh.pop %v1395
  %1398 = vrot.lane.b32.xlu0 %v1396, 64
  %v1399 = vpop.permute.xlu0 %1398
  %v1401 = vmul.f32 %v1383, %v1399
  %1403 = vrot.lane.b32.xlu0 %v1401, 32
  %v1404 = vpop.permute.xlu0 %1403
  %v1405 = vsel %vm403, %v1404, 0
  %1407 = vmatprep.subr.mxu0 0.0
  %1408 = vmatpush1.msra.mxu0 0.0
  %1409 = vmatprep.subr.mxu0 0.0
  %1410 = vmatpush1.msra.mxu0 0.0
  %1411 = vmatprep.subr.mxu0 0.0
  %1412 = vmatpush1.msra.mxu0 0.0
  %1413 = vmatprep.subr.mxu0 0.0
  %1414 = vmatpush1.msra.mxu0 0.0
  %1415 = vmatprep.subr.mxu0 0.0
  %1416 = vmatpush1.msra.mxu0 0.0
  %1417 = vmatprep.subr.mxu0 0.0
  %1418 = vmatpush1.msra.mxu0 0.0
  %1419 = vmatprep.subr.mxu0 0.0
  %1420 = vmatpush1.msra.mxu0 0.0
  %1421 = vmatprep.subr.mxu0 0.0
  %1422 = vmatpush1.msra.mxu0 0.0
  %1423 = vmatprep.subr.mxu0 0.0
  %1424 = vmatpush1.msra.mxu0 0.0
  %1425 = vmatprep.subr.mxu0 0.0
  %1426 = vmatpush1.msra.mxu0 0.0
  %1427 = vmatprep.subr.mxu0 0.0
  %1428 = vmatpush1.msra.mxu0 0.0
  %1429 = vmatprep.subr.mxu0 0.0
  %1430 = vmatpush1.msra.mxu0 0.0
  %1431 = vmatprep.subr.mxu0 0.0
  %1432 = vmatpush1.msra.mxu0 %v262
  %1433 = vmatprep.subr.mxu0 0.0
  %1434 = vmatpush1.msra.mxu0 %v261
  %1435 = vmatprep.subr.mxu0 0.0
  %1436 = vmatpush1.msra.mxu0 %v260
  %1437 = vmatprep.subr.mxu0 0.0
  %1438 = vmatpush1.msra.mxu0 %v259
  %1439 = vmatprep.subr.mxu0 0.0
  %1440 = vmatpush2.msra.mxu0 0.0
  %1441 = vmatprep.subr.mxu0 0.0
  %1442 = vmatpush2.msra.mxu0 0.0
  %1443 = vmatprep.subr.mxu0 0.0
  %1444 = vmatpush2.msra.mxu0 0.0
  %1445 = vmatprep.subr.mxu0 0.0
  %1446 = vmatpush2.msra.mxu0 0.0
  %1447 = vmatprep.subr.mxu0 0.0
  %1448 = vmatpush2.msra.mxu0 0.0
  %1449 = vmatprep.subr.mxu0 0.0
  %1450 = vmatpush2.msra.mxu0 0.0
  %1451 = vmatprep.subr.mxu0 0.0
  %1452 = vmatpush2.msra.mxu0 0.0
  %1453 = vmatprep.subr.mxu0 0.0
  %1454 = vmatpush2.msra.mxu0 0.0
  %1455 = vmatprep.subr.mxu0 0.0
  %1456 = vmatpush2.msra.mxu0 0.0
  %1457 = vmatprep.subr.mxu0 0.0
  %1458 = vmatpush2.msra.mxu0 0.0
  %1459 = vmatprep.subr.mxu0 0.0
  %1460 = vmatpush2.msra.mxu0 0.0
  %1461 = vmatprep.subr.mxu0 0.0
  %1462 = vmatpush2.msra.mxu0 0.0
  %1463 = vmatprep.subr.mxu0 0.0
  %1464 = vmatpush2.msra.mxu0 0.0
  %1465 = vmatprep.subr.mxu0 0.0
  %1466 = vmatpush2.msra.mxu0 0.0
  %1467 = vmatprep.subr.mxu0 0.0
  %1468 = vmatpush2.msra.mxu0 0.0
  %1469 = vmatprep.subr.mxu0 0.0
  %1470 = vmatpush2.msra.mxu0 0.0
  %1471 = vmatprep.mubr.f32.mxu0 0.0
  %1472 = vmatmul.mubr.f32.gmra.mxu0 %v1405
  %v1473 = vpop.f32.mrf.mxu0
  %v1474 = vadd.f32 0.0, %v1473
  %v1475 = vpop.f32.mrf.mxu0
  %1476 = vdwg.mxu0
  %v1477 = vadd.f32 %v375, %v1474
  %v1478 = vxor.u32 %v1477, 2147483648
  %v1479 = vmul.f32 %v1478, 1.442695
  %v1480 = vpow.pop %v1479
  %v1481 = vadd.f32 %v1480, 1.0
  %v1482 = vrcp.pop %v1481
  %v1483 = vmul.f32 1.0, %v1482
  %v1484 = vtanh.pop %v1477
  %v1485 = vmul.f32 %v1483, %v1395
  %1487 = vrot.lane.b32.xlu0 %v1484, 64
  %v1488 = vpop.permute.xlu0 %1487
  %v1490 = vmul.f32 %v1483, %v1488
  %1492 = vrot.lane.b32.xlu0 %v1490, 32
  %v1493 = vpop.permute.xlu0 %1492
  %v1495 = vadd.f32 %v1485, %v1493
  %v1496 = vtanh.pop %v1495
  %1498 = vrot.lane.b32.xlu0 %v1496, 64
  %v1499 = vpop.permute.xlu0 %1498
  %v1501 = vmul.f32 %v1483, %v1499
  %1503 = vrot.lane.b32.xlu0 %v1501, 32
  %v1504 = vpop.permute.xlu0 %1503
  %v1505 = vsel %vm403, %v1504, 0
  %1507 = vmatprep.subr.mxu0 0.0
  %1508 = vmatpush1.msra.mxu0 0.0
  %1509 = vmatprep.subr.mxu0 0.0
  %1510 = vmatpush1.msra.mxu0 0.0
  %1511 = vmatprep.subr.mxu0 0.0
  %1512 = vmatpush1.msra.mxu0 0.0
  %1513 = vmatprep.subr.mxu0 0.0
  %1514 = vmatpush1.msra.mxu0 0.0
  %1515 = vmatprep.subr.mxu0 0.0
  %1516 = vmatpush1.msra.mxu0 0.0
  %1517 = vmatprep.subr.mxu0 0.0
  %1518 = vmatpush1.msra.mxu0 0.0
  %1519 = vmatprep.subr.mxu0 0.0
  %1520 = vmatpush1.msra.mxu0 0.0
  %1521 = vmatprep.subr.mxu0 0.0
  %1522 = vmatpush1.msra.mxu0 0.0
  %1523 = vmatprep.subr.mxu0 0.0
  %1524 = vmatpush1.msra.mxu0 0.0
  %1525 = vmatprep.subr.mxu0 0.0
  %1526 = vmatpush1.msra.mxu0 0.0
  %1527 = vmatprep.subr.mxu0 0.0
  %1528 = vmatpush1.msra.mxu0 0.0
  %1529 = vmatprep.subr.mxu0 0.0
  %1530 = vmatpush1.msra.mxu0 0.0
  %1531 = vmatprep.subr.mxu0 0.0
  %1532 = vmatpush1.msra.mxu0 %v262
  %1533 = vmatprep.subr.mxu0 0.0
  %1534 = vmatpush1.msra.mxu0 %v261
  %1535 = vmatprep.subr.mxu0 0.0
  %1536 = vmatpush1.msra.mxu0 %v260
  %1537 = vmatprep.subr.mxu0 0.0
  %1538 = vmatpush1.msra.mxu0 %v259
  %1539 = vmatprep.subr.mxu0 0.0
  %1540 = vmatpush2.msra.mxu0 0.0
  %1541 = vmatprep.subr.mxu0 0.0
  %1542 = vmatpush2.msra.mxu0 0.0
  %1543 = vmatprep.subr.mxu0 0.0
  %1544 = vmatpush2.msra.mxu0 0.0
  %1545 = vmatprep.subr.mxu0 0.0
  %1546 = vmatpush2.msra.mxu0 0.0
  %1547 = vmatprep.subr.mxu0 0.0
  %1548 = vmatpush2.msra.mxu0 0.0
  %1549 = vmatprep.subr.mxu0 0.0
  %1550 = vmatpush2.msra.mxu0 0.0
  %1551 = vmatprep.subr.mxu0 0.0
  %1552 = vmatpush2.msra.mxu0 0.0
  %1553 = vmatprep.subr.mxu0 0.0
  %1554 = vmatpush2.msra.mxu0 0.0
  %1555 = vmatprep.subr.mxu0 0.0
  %1556 = vmatpush2.msra.mxu0 0.0
  %1557 = vmatprep.subr.mxu0 0.0
  %1558 = vmatpush2.msra.mxu0 0.0
  %1559 = vmatprep.subr.mxu0 0.0
  %1560 = vmatpush2.msra.mxu0 0.0
  %1561 = vmatprep.subr.mxu0 0.0
  %1562 = vmatpush2.msra.mxu0 0.0
  %1563 = vmatprep.subr.mxu0 0.0
  %1564 = vmatpush2.msra.mxu0 0.0
  %1565 = vmatprep.subr.mxu0 0.0
  %1566 = vmatpush2.msra.mxu0 0.0
  %1567 = vmatprep.subr.mxu0 0.0
  %1568 = vmatpush2.msra.mxu0 0.0
  %1569 = vmatprep.subr.mxu0 0.0
  %1570 = vmatpush2.msra.mxu0 0.0
  %1571 = vmatprep.mubr.f32.mxu0 0.0
  %1572 = vmatmul.mubr.f32.gmra.mxu0 %v1505
  %v1573 = vpop.f32.mrf.mxu0
  %v1574 = vadd.f32 0.0, %v1573
  %v1575 = vpop.f32.mrf.mxu0
  %1576 = vdwg.mxu0
  %v1577 = vadd.f32 %v380, %v1574
  %v1578 = vxor.u32 %v1577, 2147483648
  %v1579 = vmul.f32 %v1578, 1.442695
  %v1580 = vpow.pop %v1579
  %v1581 = vadd.f32 %v1580, 1.0
  %v1582 = vrcp.pop %v1581
  %v1583 = vmul.f32 1.0, %v1582
  %v1584 = vtanh.pop %v1577
  %v1585 = vmul.f32 %v1583, %v1495
  %1587 = vrot.lane.b32.xlu0 %v1584, 64
  %v1588 = vpop.permute.xlu0 %1587
  %v1590 = vmul.f32 %v1583, %v1588
  %1592 = vrot.lane.b32.xlu0 %v1590, 32
  %v1593 = vpop.permute.xlu0 %1592
  %v1595 = vadd.f32 %v1585, %v1593
  %v1596 = vtanh.pop %v1595
  %1598 = vrot.lane.b32.xlu0 %v1596, 64
  %v1599 = vpop.permute.xlu0 %1598
  %v1601 = vmul.f32 %v1583, %v1599
  %1603 = vrot.lane.b32.xlu0 %v1601, 32
  %v1604 = vpop.permute.xlu0 %1603
  %v1605 = vsel %vm403, %v1604, 0
  %1607 = vmatprep.subr.mxu0 0.0
  %1608 = vmatpush1.msra.mxu0 0.0
  %1609 = vmatprep.subr.mxu0 0.0
  %1610 = vmatpush1.msra.mxu0 0.0
  %1611 = vmatprep.subr.mxu0 0.0
  %1612 = vmatpush1.msra.mxu0 0.0
  %1613 = vmatprep.subr.mxu0 0.0
  %1614 = vmatpush1.msra.mxu0 0.0
  %1615 = vmatprep.subr.mxu0 0.0
  %1616 = vmatpush1.msra.mxu0 0.0
  %1617 = vmatprep.subr.mxu0 0.0
  %1618 = vmatpush1.msra.mxu0 0.0
  %1619 = vmatprep.subr.mxu0 0.0
  %1620 = vmatpush1.msra.mxu0 0.0
  %1621 = vmatprep.subr.mxu0 0.0
  %1622 = vmatpush1.msra.mxu0 0.0
  %1623 = vmatprep.subr.mxu0 0.0
  %1624 = vmatpush1.msra.mxu0 0.0
  %1625 = vmatprep.subr.mxu0 0.0
  %1626 = vmatpush1.msra.mxu0 0.0
  %1627 = vmatprep.subr.mxu0 0.0
  %1628 = vmatpush1.msra.mxu0 0.0
  %1629 = vmatprep.subr.mxu0 0.0
  %1630 = vmatpush1.msra.mxu0 0.0
  %1631 = vmatprep.subr.mxu0 0.0
  %1632 = vmatpush1.msra.mxu0 %v262
  %1633 = vmatprep.subr.mxu0 0.0
  %1634 = vmatpush1.msra.mxu0 %v261
  %1635 = vmatprep.subr.mxu0 0.0
  %1636 = vmatpush1.msra.mxu0 %v260
  %1637 = vmatprep.subr.mxu0 0.0
  %1638 = vmatpush1.msra.mxu0 %v259
  %1639 = vmatprep.subr.mxu0 0.0
  %1640 = vmatpush2.msra.mxu0 0.0
  %1641 = vmatprep.subr.mxu0 0.0
  %1642 = vmatpush2.msra.mxu0 0.0
  %1643 = vmatprep.subr.mxu0 0.0
  %1644 = vmatpush2.msra.mxu0 0.0
  %1645 = vmatprep.subr.mxu0 0.0
  %1646 = vmatpush2.msra.mxu0 0.0
  %1647 = vmatprep.subr.mxu0 0.0
  %1648 = vmatpush2.msra.mxu0 0.0
  %1649 = vmatprep.subr.mxu0 0.0
  %1650 = vmatpush2.msra.mxu0 0.0
  %1651 = vmatprep.subr.mxu0 0.0
  %1652 = vmatpush2.msra.mxu0 0.0
  %1653 = vmatprep.subr.mxu0 0.0
  %1654 = vmatpush2.msra.mxu0 0.0
  %1655 = vmatprep.subr.mxu0 0.0
  %1656 = vmatpush2.msra.mxu0 0.0
  %1657 = vmatprep.subr.mxu0 0.0
  %1658 = vmatpush2.msra.mxu0 0.0
  %1659 = vmatprep.subr.mxu0 0.0
  %1660 = vmatpush2.msra.mxu0 0.0
  %1661 = vmatprep.subr.mxu0 0.0
  %1662 = vmatpush2.msra.mxu0 0.0
  %1663 = vmatprep.subr.mxu0 0.0
  %1664 = vmatpush2.msra.mxu0 0.0
  %1665 = vmatprep.subr.mxu0 0.0
  %1666 = vmatpush2.msra.mxu0 0.0
  %1667 = vmatprep.subr.mxu0 0.0
  %1668 = vmatpush2.msra.mxu0 0.0
  %1669 = vmatprep.subr.mxu0 0.0
  %1670 = vmatpush2.msra.mxu0 0.0
  %1671 = vmatprep.mubr.f32.mxu0 0.0
  %1672 = vmatmul.mubr.f32.gmra.mxu0 %v1605
  %v1673 = vpop.f32.mrf.mxu0
  %v1674 = vadd.f32 0.0, %v1673
  %v1675 = vpop.f32.mrf.mxu0
  %1676 = vdwg.mxu0
  %v1677 = vadd.f32 %v385, %v1674
  %v1678 = vxor.u32 %v1677, 2147483648
  %v1679 = vmul.f32 %v1678, 1.442695
  %v1680 = vpow.pop %v1679
  %v1681 = vadd.f32 %v1680, 1.0
  %v1682 = vrcp.pop %v1681
  %v1683 = vmul.f32 1.0, %v1682
  %v1684 = vtanh.pop %v1677
  %v1685 = vmul.f32 %v1683, %v1595
  %1687 = vrot.lane.b32.xlu0 %v1684, 64
  %v1688 = vpop.permute.xlu0 %1687
  %v1690 = vmul.f32 %v1683, %v1688
  %1692 = vrot.lane.b32.xlu0 %v1690, 32
  %v1693 = vpop.permute.xlu0 %1692
  %v1695 = vadd.f32 %v1685, %v1693
  %v1696 = vtanh.pop %v1695
  %1698 = vrot.lane.b32.xlu0 %v1696, 64
  %v1699 = vpop.permute.xlu0 %1698
  %v1701 = vmul.f32 %v1683, %v1699
  %1703 = vrot.lane.b32.xlu0 %v1701, 32
  %v1704 = vpop.permute.xlu0 %1703
  %v1705 = vsel %vm403, %v1704, 0
  %1707 = vmatprep.subr.mxu0 0.0
  %1708 = vmatpush1.msra.mxu0 0.0
  %1709 = vmatprep.subr.mxu0 0.0
  %1710 = vmatpush1.msra.mxu0 0.0
  %1711 = vmatprep.subr.mxu0 0.0
  %1712 = vmatpush1.msra.mxu0 0.0
  %1713 = vmatprep.subr.mxu0 0.0
  %1714 = vmatpush1.msra.mxu0 0.0
  %1715 = vmatprep.subr.mxu0 0.0
  %1716 = vmatpush1.msra.mxu0 0.0
  %1717 = vmatprep.subr.mxu0 0.0
  %1718 = vmatpush1.msra.mxu0 0.0
  %1719 = vmatprep.subr.mxu0 0.0
  %1720 = vmatpush1.msra.mxu0 0.0
  %1721 = vmatprep.subr.mxu0 0.0
  %1722 = vmatpush1.msra.mxu0 0.0
  %1723 = vmatprep.subr.mxu0 0.0
  %1724 = vmatpush1.msra.mxu0 0.0
  %1725 = vmatprep.subr.mxu0 0.0
  %1726 = vmatpush1.msra.mxu0 0.0
  %1727 = vmatprep.subr.mxu0 0.0
  %1728 = vmatpush1.msra.mxu0 0.0
  %1729 = vmatprep.subr.mxu0 0.0
  %1730 = vmatpush1.msra.mxu0 0.0
  %1731 = vmatprep.subr.mxu0 0.0
  %1732 = vmatpush1.msra.mxu0 %v262
  %1733 = vmatprep.subr.mxu0 0.0
  %1734 = vmatpush1.msra.mxu0 %v261
  %1735 = vmatprep.subr.mxu0 0.0
  %1736 = vmatpush1.msra.mxu0 %v260
  %1737 = vmatprep.subr.mxu0 0.0
  %1738 = vmatpush1.msra.mxu0 %v259
  %1739 = vmatprep.subr.mxu0 0.0
  %1740 = vmatpush2.msra.mxu0 0.0
  %1741 = vmatprep.subr.mxu0 0.0
  %1742 = vmatpush2.msra.mxu0 0.0
  %1743 = vmatprep.subr.mxu0 0.0
  %1744 = vmatpush2.msra.mxu0 0.0
  %1745 = vmatprep.subr.mxu0 0.0
  %1746 = vmatpush2.msra.mxu0 0.0
  %1747 = vmatprep.subr.mxu0 0.0
  %1748 = vmatpush2.msra.mxu0 0.0
  %1749 = vmatprep.subr.mxu0 0.0
  %1750 = vmatpush2.msra.mxu0 0.0
  %1751 = vmatprep.subr.mxu0 0.0
  %1752 = vmatpush2.msra.mxu0 0.0
  %1753 = vmatprep.subr.mxu0 0.0
  %1754 = vmatpush2.msra.mxu0 0.0
  %1755 = vmatprep.subr.mxu0 0.0
  %1756 = vmatpush2.msra.mxu0 0.0
  %1757 = vmatprep.subr.mxu0 0.0
  %1758 = vmatpush2.msra.mxu0 0.0
  %1759 = vmatprep.subr.mxu0 0.0
  %1760 = vmatpush2.msra.mxu0 0.0
  %1761 = vmatprep.subr.mxu0 0.0
  %1762 = vmatpush2.msra.mxu0 0.0
  %1763 = vmatprep.subr.mxu0 0.0
  %1764 = vmatpush2.msra.mxu0 0.0
  %1765 = vmatprep.subr.mxu0 0.0
  %1766 = vmatpush2.msra.mxu0 0.0
  %1767 = vmatprep.subr.mxu0 0.0
  %1768 = vmatpush2.msra.mxu0 0.0
  %1769 = vmatprep.subr.mxu0 0.0
  %1770 = vmatpush2.msra.mxu0 0.0
  %1771 = vmatprep.mubr.f32.mxu0 0.0
  %1772 = vmatmul.mubr.f32.gmra.mxu0 %v1705
  %v1773 = vpop.f32.mrf.mxu0
  %v1774 = vadd.f32 0.0, %v1773
  %v1775 = vpop.f32.mrf.mxu0
  %1776 = vdwg.mxu0
  %v1777 = vadd.f32 %v390, %v1774
  %v1778 = vxor.u32 %v1777, 2147483648
  %v1779 = vmul.f32 %v1778, 1.442695
  %v1780 = vpow.pop %v1779
  %v1781 = vadd.f32 %v1780, 1.0
  %v1782 = vrcp.pop %v1781
  %v1783 = vmul.f32 1.0, %v1782
  %v1784 = vtanh.pop %v1777
  %v1785 = vmul.f32 %v1783, %v1695
  %1787 = vrot.lane.b32.xlu0 %v1784, 64
  %v1788 = vpop.permute.xlu0 %1787
  %v1790 = vmul.f32 %v1783, %v1788
  %1792 = vrot.lane.b32.xlu0 %v1790, 32
  %v1793 = vpop.permute.xlu0 %1792
  %v1795 = vadd.f32 %v1785, %v1793
  %v1796 = vtanh.pop %v1795
  %1798 = vrot.lane.b32.xlu0 %v1796, 64
  %v1799 = vpop.permute.xlu0 %1798
  %v1801 = vmul.f32 %v1783, %v1799
  %1803 = vrot.lane.b32.xlu0 %v1801, 32
  %v1804 = vpop.permute.xlu0 %1803
  %v1805 = vsel %vm403, %v1804, 0
  %1807 = vmatprep.subr.mxu0 0.0
  %1808 = vmatpush1.msra.mxu0 0.0
  %1809 = vmatprep.subr.mxu0 0.0
  %1810 = vmatpush1.msra.mxu0 0.0
  %1811 = vmatprep.subr.mxu0 0.0
  %1812 = vmatpush1.msra.mxu0 0.0
  %1813 = vmatprep.subr.mxu0 0.0
  %1814 = vmatpush1.msra.mxu0 0.0
  %1815 = vmatprep.subr.mxu0 0.0
  %1816 = vmatpush1.msra.mxu0 0.0
  %1817 = vmatprep.subr.mxu0 0.0
  %1818 = vmatpush1.msra.mxu0 0.0
  %1819 = vmatprep.subr.mxu0 0.0
  %1820 = vmatpush1.msra.mxu0 0.0
  %1821 = vmatprep.subr.mxu0 0.0
  %1822 = vmatpush1.msra.mxu0 0.0
  %1823 = vmatprep.subr.mxu0 0.0
  %1824 = vmatpush1.msra.mxu0 0.0
  %1825 = vmatprep.subr.mxu0 0.0
  %1826 = vmatpush1.msra.mxu0 0.0
  %1827 = vmatprep.subr.mxu0 0.0
  %1828 = vmatpush1.msra.mxu0 0.0
  %1829 = vmatprep.subr.mxu0 0.0
  %1830 = vmatpush1.msra.mxu0 0.0
  %1831 = vmatprep.subr.mxu0 0.0
  %1832 = vmatpush1.msra.mxu0 %v262
  %1833 = vmatprep.subr.mxu0 0.0
  %1834 = vmatpush1.msra.mxu0 %v261
  %1835 = vmatprep.subr.mxu0 0.0
  %1836 = vmatpush1.msra.mxu0 %v260
  %1837 = vmatprep.subr.mxu0 0.0
  %1838 = vmatpush1.msra.mxu0 %v259
  %1839 = vmatprep.subr.mxu0 0.0
  %1840 = vmatpush2.msra.mxu0 0.0
  %1841 = vmatprep.subr.mxu0 0.0
  %1842 = vmatpush2.msra.mxu0 0.0
  %1843 = vmatprep.subr.mxu0 0.0
  %1844 = vmatpush2.msra.mxu0 0.0
  %1845 = vmatprep.subr.mxu0 0.0
  %1846 = vmatpush2.msra.mxu0 0.0
  %1847 = vmatprep.subr.mxu0 0.0
  %1848 = vmatpush2.msra.mxu0 0.0
  %1849 = vmatprep.subr.mxu0 0.0
  %1850 = vmatpush2.msra.mxu0 0.0
  %1851 = vmatprep.subr.mxu0 0.0
  %1852 = vmatpush2.msra.mxu0 0.0
  %1853 = vmatprep.subr.mxu0 0.0
  %1854 = vmatpush2.msra.mxu0 0.0
  %1855 = vmatprep.subr.mxu0 0.0
  %1856 = vmatpush2.msra.mxu0 0.0
  %1857 = vmatprep.subr.mxu0 0.0
  %1858 = vmatpush2.msra.mxu0 0.0
  %1859 = vmatprep.subr.mxu0 0.0
  %1860 = vmatpush2.msra.mxu0 0.0
  %1861 = vmatprep.subr.mxu0 0.0
  %1862 = vmatpush2.msra.mxu0 0.0
  %1863 = vmatprep.subr.mxu0 0.0
  %1864 = vmatpush2.msra.mxu0 0.0
  %1865 = vmatprep.subr.mxu0 0.0
  %1866 = vmatpush2.msra.mxu0 0.0
  %1867 = vmatprep.subr.mxu0 0.0
  %1868 = vmatpush2.msra.mxu0 0.0
  %1869 = vmatprep.subr.mxu0 0.0
  %1870 = vmatpush2.msra.mxu0 0.0
  %1871 = vmatprep.mubr.f32.mxu0 0.0
  %1872 = vmatmul.mubr.f32.gmra.mxu0 %v1805
  %v1873 = vpop.f32.mrf.mxu0
  %v1874 = vadd.f32 0.0, %v1873
  %v1875 = vpop.f32.mrf.mxu0
  %1876 = vdwg.mxu0
  %v1877 = vadd.f32 %v395, %v1874
  %v1878 = vxor.u32 %v1877, 2147483648
  %v1879 = vmul.f32 %v1878, 1.442695
  %v1880 = vpow.pop %v1879
  %v1881 = vadd.f32 %v1880, 1.0
  %v1882 = vrcp.pop %v1881
  %v1883 = vmul.f32 1.0, %v1882
  %v1884 = vtanh.pop %v1877
  %v1885 = vmul.f32 %v1883, %v1795
  %1887 = vrot.lane.b32.xlu0 %v1884, 64
  %v1888 = vpop.permute.xlu0 %1887
  %v1890 = vmul.f32 %v1883, %v1888
  %1892 = vrot.lane.b32.xlu0 %v1890, 32
  %v1893 = vpop.permute.xlu0 %1892
  %v1895 = vadd.f32 %v1885, %v1893
  %v1896 = vtanh.pop %v1895
  %1898 = vrot.lane.b32.xlu0 %v1896, 64
  %v1899 = vpop.permute.xlu0 %1898
  %v1901 = vmul.f32 %v1883, %v1899
  %1903 = vrot.lane.b32.xlu0 %v1901, 32
  %v1904 = vpop.permute.xlu0 %1903
  %v1905 = vsel %vm403, %v1904, 0
  %1907 = vmatprep.subr.mxu0 0.0
  %1908 = vmatpush1.msra.mxu0 0.0
  %1909 = vmatprep.subr.mxu0 0.0
  %1910 = vmatpush1.msra.mxu0 0.0
  %1911 = vmatprep.subr.mxu0 0.0
  %1912 = vmatpush1.msra.mxu0 0.0
  %1913 = vmatprep.subr.mxu0 0.0
  %1914 = vmatpush1.msra.mxu0 0.0
  %1915 = vmatprep.subr.mxu0 0.0
  %1916 = vmatpush1.msra.mxu0 0.0
  %1917 = vmatprep.subr.mxu0 0.0
  %1918 = vmatpush1.msra.mxu0 0.0
  %1919 = vmatprep.subr.mxu0 0.0
  %1920 = vmatpush1.msra.mxu0 0.0
  %1921 = vmatprep.subr.mxu0 0.0
  %1922 = vmatpush1.msra.mxu0 0.0
  %1923 = vmatprep.subr.mxu0 0.0
  %1924 = vmatpush1.msra.mxu0 0.0
  %1925 = vmatprep.subr.mxu0 0.0
  %1926 = vmatpush1.msra.mxu0 0.0
  %1927 = vmatprep.subr.mxu0 0.0
  %1928 = vmatpush1.msra.mxu0 0.0
  %1929 = vmatprep.subr.mxu0 0.0
  %1930 = vmatpush1.msra.mxu0 0.0
  %1931 = vmatprep.subr.mxu0 0.0
  %1932 = vmatpush1.msra.mxu0 %v262
  %1933 = vmatprep.subr.mxu0 0.0
  %1934 = vmatpush1.msra.mxu0 %v261
  %1935 = vmatprep.subr.mxu0 0.0
  %1936 = vmatpush1.msra.mxu0 %v260
  %1937 = vmatprep.subr.mxu0 0.0
  %1938 = vmatpush1.msra.mxu0 %v259
  %1939 = vmatprep.subr.mxu0 0.0
  %1940 = vmatpush2.msra.mxu0 0.0
  %1941 = vmatprep.subr.mxu0 0.0
  %1942 = vmatpush2.msra.mxu0 0.0
  %1943 = vmatprep.subr.mxu0 0.0
  %1944 = vmatpush2.msra.mxu0 0.0
  %1945 = vmatprep.subr.mxu0 0.0
  %1946 = vmatpush2.msra.mxu0 0.0
  %1947 = vmatprep.subr.mxu0 0.0
  %1948 = vmatpush2.msra.mxu0 0.0
  %1949 = vmatprep.subr.mxu0 0.0
  %1950 = vmatpush2.msra.mxu0 0.0
  %1951 = vmatprep.subr.mxu0 0.0
  %1952 = vmatpush2.msra.mxu0 0.0
  %1953 = vmatprep.subr.mxu0 0.0
  %1954 = vmatpush2.msra.mxu0 0.0
  %1955 = vmatprep.subr.mxu0 0.0
  %1956 = vmatpush2.msra.mxu0 0.0
  %1957 = vmatprep.subr.mxu0 0.0
  %1958 = vmatpush2.msra.mxu0 0.0
  %1959 = vmatprep.subr.mxu0 0.0
  %1960 = vmatpush2.msra.mxu0 0.0
  %1961 = vmatprep.subr.mxu0 0.0
  %1962 = vmatpush2.msra.mxu0 0.0
  %1963 = vmatprep.subr.mxu0 0.0
  %1964 = vmatpush2.msra.mxu0 0.0
  %1965 = vmatprep.subr.mxu0 0.0
  %1966 = vmatpush2.msra.mxu0 0.0
  %1967 = vmatprep.subr.mxu0 0.0
  %1968 = vmatpush2.msra.mxu0 0.0
  %1969 = vmatprep.subr.mxu0 0.0
  %1970 = vmatpush2.msra.mxu0 0.0
  %1971 = vmatprep.mubr.f32.mxu0 0.0
  %1972 = vmatmul.mubr.f32.gmra.mxu0 %v1905
  %v1973 = vpop.f32.mrf.mxu0
  %v1974 = vadd.f32 0.0, %v1973
  %v1975 = vpop.f32.mrf.mxu0
  %1976 = vdwg.mxu0
  %v1977 = vadd.f32 %v400, %v1974
  %v1978 = vxor.u32 %v1977, 2147483648
  %v1979 = vmul.f32 %v1978, 1.442695
  %v1980 = vpow.pop %v1979
  %v1981 = vadd.f32 %v1980, 1.0
  %v1982 = vrcp.pop %v1981
  %v1983 = vmul.f32 1.0, %v1982
  %v1984 = vtanh.pop %v1977
  %v1985 = vmul.f32 %v1983, %v1895
  %1987 = vrot.lane.b32.xlu0 %v1984, 64
  %v1988 = vpop.permute.xlu0 %1987
  %v1990 = vmul.f32 %v1983, %v1988
  %1992 = vrot.lane.b32.xlu0 %v1990, 32
  %v1993 = vpop.permute.xlu0 %1992
  %v1995 = vadd.f32 %v1985, %v1993
  %v1996 = vtanh.pop %v1995
  %1998 = vrot.lane.b32.xlu0 %v1996, 64
  %v1999 = vpop.permute.xlu0 %1998
  %v2001 = vmul.f32 %v1983, %v1999
  %2003 = vrot.lane.b32.xlu0 %v2001, 32
  %v2004 = vpop.permute.xlu0 %2003
  %2006 = vst.msk [vmem:[%s9] sm:$0xff] %vm403, %v2004
  %2008 = vrot.lane.b32.xlu0 %v1995, 96
  %v2009 = vpop.permute.xlu0 %2008
  %2011 = vst.msk [vmem:[%s10] sm:$0xff] %vm403, %v2009
  %v2012 = vld [vmem:[%s4] sm:$0xff]
  %v2013 = vld [vmem:[%s4 + $0x8] sm:$0xff]
  %v2014 = vld [vmem:[%s4 + $0x10] sm:$0xff]
  %v2015 = vld [vmem:[%s4 + $0x18] sm:$0xff]
  %v2016 = vld [vmem:[%s5] sm:$0x1]
  %v2018 = vlaneseq
  %v2019 = vshrl.u32 %v2018, 7
  %v2020 = vsub.s32 0, %v2019
  %v2021 = vrot.slane %v2016, %v2020
  %v2023 = vsel %vm403, %v2004, 0
  %2025 = vmatprep.subr.mxu0 0.0
  %2026 = vmatpush1.msra.mxu0 0.0
  %2027 = vmatprep.subr.mxu0 0.0
  %2028 = vmatpush1.msra.mxu0 0.0
  %2029 = vmatprep.subr.mxu0 0.0
  %2030 = vmatpush1.msra.mxu0 0.0
  %2031 = vmatprep.subr.mxu0 0.0
  %2032 = vmatpush1.msra.mxu0 0.0
  %2033 = vmatprep.subr.mxu0 0.0
  %2034 = vmatpush1.msra.mxu0 0.0
  %2035 = vmatprep.subr.mxu0 0.0
  %2036 = vmatpush1.msra.mxu0 0.0
  %2037 = vmatprep.subr.mxu0 0.0
  %2038 = vmatpush1.msra.mxu0 0.0
  %2039 = vmatprep.subr.mxu0 0.0
  %2040 = vmatpush1.msra.mxu0 0.0
  %2041 = vmatprep.subr.mxu0 0.0
  %2042 = vmatpush1.msra.mxu0 0.0
  %2043 = vmatprep.subr.mxu0 0.0
  %2044 = vmatpush1.msra.mxu0 0.0
  %2045 = vmatprep.subr.mxu0 0.0
  %2046 = vmatpush1.msra.mxu0 0.0
  %2047 = vmatprep.subr.mxu0 0.0
  %2048 = vmatpush1.msra.mxu0 0.0
  %2049 = vmatprep.subr.mxu0 0.0
  %2050 = vmatpush1.msra.mxu0 %v2015
  %2051 = vmatprep.subr.mxu0 0.0
  %2052 = vmatpush1.msra.mxu0 %v2014
  %2053 = vmatprep.subr.mxu0 0.0
  %2054 = vmatpush1.msra.mxu0 %v2013
  %2055 = vmatprep.subr.mxu0 0.0
  %2056 = vmatpush1.msra.mxu0 %v2012
  %2057 = vmatprep.subr.mxu0 0.0
  %2058 = vmatpush2.msra.mxu0 0.0
  %2059 = vmatprep.subr.mxu0 0.0
  %2060 = vmatpush2.msra.mxu0 0.0
  %2061 = vmatprep.subr.mxu0 0.0
  %2062 = vmatpush2.msra.mxu0 0.0
  %2063 = vmatprep.subr.mxu0 0.0
  %2064 = vmatpush2.msra.mxu0 0.0
  %2065 = vmatprep.subr.mxu0 0.0
  %2066 = vmatpush2.msra.mxu0 0.0
  %2067 = vmatprep.subr.mxu0 0.0
  %2068 = vmatpush2.msra.mxu0 0.0
  %2069 = vmatprep.subr.mxu0 0.0
  %2070 = vmatpush2.msra.mxu0 0.0
  %2071 = vmatprep.subr.mxu0 0.0
  %2072 = vmatpush2.msra.mxu0 0.0
  %2073 = vmatprep.subr.mxu0 0.0
  %2074 = vmatpush2.msra.mxu0 0.0
  %2075 = vmatprep.subr.mxu0 0.0
  %2076 = vmatpush2.msra.mxu0 0.0
  %2077 = vmatprep.subr.mxu0 0.0
  %2078 = vmatpush2.msra.mxu0 0.0
  %2079 = vmatprep.subr.mxu0 0.0
  %2080 = vmatpush2.msra.mxu0 0.0
  %2081 = vmatprep.subr.mxu0 0.0
  %2082 = vmatpush2.msra.mxu0 0.0
  %2083 = vmatprep.subr.mxu0 0.0
  %2084 = vmatpush2.msra.mxu0 0.0
  %2085 = vmatprep.subr.mxu0 0.0
  %2086 = vmatpush2.msra.mxu0 0.0
  %2087 = vmatprep.subr.mxu0 0.0
  %2088 = vmatpush2.msra.mxu0 0.0
  %2089 = vmatprep.mubr.f32.mxu0 0.0
  %2090 = vmatmul.mubr.f32.gmra.mxu0 %v1305
  %v2091 = vpop.f32.mrf.mxu0
  %v2092 = vadd.f32 %v2021, %v2091
  %v2093 = vpop.f32.mrf.mxu0
  %2094 = vmatprep.mubr.f32.mxu0 0.0
  %2095 = vmatmul.mubr.f32.gmra.mxu0 %v1405
  %v2096 = vpop.f32.mrf.mxu0
  %v2097 = vadd.f32 %v2021, %v2096
  %v2098 = vpop.f32.mrf.mxu0
  %2099 = vmatprep.mubr.f32.mxu0 0.0
  %2100 = vmatmul.mubr.f32.gmra.mxu0 %v1505
  %v2101 = vpop.f32.mrf.mxu0
  %v2102 = vadd.f32 %v2021, %v2101
  %v2103 = vpop.f32.mrf.mxu0
  %2104 = vmatprep.mubr.f32.mxu0 0.0
  %2105 = vmatmul.mubr.f32.gmra.mxu0 %v1605
  %v2106 = vpop.f32.mrf.mxu0
  %v2107 = vadd.f32 %v2021, %v2106
  %v2108 = vpop.f32.mrf.mxu0
  %2109 = vmatprep.mubr.f32.mxu0 0.0
  %2110 = vmatmul.mubr.f32.gmra.mxu0 %v1705
  %v2111 = vpop.f32.mrf.mxu0
  %v2112 = vadd.f32 %v2021, %v2111
  %v2113 = vpop.f32.mrf.mxu0
  %2114 = vmatprep.mubr.f32.mxu0 0.0
  %2115 = vmatmul.mubr.f32.gmra.mxu0 %v1805
  %v2116 = vpop.f32.mrf.mxu0
  %v2117 = vadd.f32 %v2021, %v2116
  %v2118 = vpop.f32.mrf.mxu0
  %2119 = vmatprep.mubr.f32.mxu0 0.0
  %2120 = vmatmul.mubr.f32.gmra.mxu0 %v1905
  %v2121 = vpop.f32.mrf.mxu0
  %v2122 = vadd.f32 %v2021, %v2121
  %v2123 = vpop.f32.mrf.mxu0
  %2124 = vmatprep.mubr.f32.mxu0 0.0
  %2125 = vmatmul.mubr.f32.gmra.mxu0 %v2023
  %v2126 = vpop.f32.mrf.mxu0
  %v2127 = vadd.f32 %v2021, %v2126
  %v2128 = vpop.f32.mrf.mxu0
  %2129 = vdwg.mxu0
  %v2130 = vld [vmem:[%s6] sm:$0xff]
  %v2131 = vld [vmem:[%s6 + $0x8] sm:$0xff]
  %v2132 = vld [vmem:[%s6 + $0x10] sm:$0xff]
  %v2133 = vld [vmem:[%s6 + $0x18] sm:$0xff]
  %v2134 = vld [vmem:[%s7] sm:$0x1]
  %v2136 = vlaneseq
  %v2137 = vshrl.u32 %v2136, 7
  %v2138 = vsub.s32 0, %v2137
  %v2139 = vrot.slane %v2134, %v2138
  %v2142 = vsel %vm403, %v2092, 0
  %v2145 = vsel %vm403, %v2097, 0
  %v2148 = vsel %vm403, %v2102, 0
  %v2151 = vsel %vm403, %v2107, 0
  %v2154 = vsel %vm403, %v2112, 0
  %v2157 = vsel %vm403, %v2117, 0
  %v2160 = vsel %vm403, %v2122, 0
  %v2163 = vsel %vm403, %v2127, 0
  %2165 = vmatprep.subr.mxu0 0.0
  %2166 = vmatpush1.msra.mxu0 0.0
  %2167 = vmatprep.subr.mxu0 0.0
  %2168 = vmatpush1.msra.mxu0 0.0
  %2169 = vmatprep.subr.mxu0 0.0
  %2170 = vmatpush1.msra.mxu0 0.0
  %2171 = vmatprep.subr.mxu0 0.0
  %2172 = vmatpush1.msra.mxu0 0.0
  %2173 = vmatprep.subr.mxu0 0.0
  %2174 = vmatpush1.msra.mxu0 0.0
  %2175 = vmatprep.subr.mxu0 0.0
  %2176 = vmatpush1.msra.mxu0 0.0
  %2177 = vmatprep.subr.mxu0 0.0
  %2178 = vmatpush1.msra.mxu0 0.0
  %2179 = vmatprep.subr.mxu0 0.0
  %2180 = vmatpush1.msra.mxu0 0.0
  %2181 = vmatprep.subr.mxu0 0.0
  %2182 = vmatpush1.msra.mxu0 0.0
  %2183 = vmatprep.subr.mxu0 0.0
  %2184 = vmatpush1.msra.mxu0 0.0
  %2185 = vmatprep.subr.mxu0 0.0
  %2186 = vmatpush1.msra.mxu0 0.0
  %2187 = vmatprep.subr.mxu0 0.0
  %2188 = vmatpush1.msra.mxu0 0.0
  %2189 = vmatprep.subr.mxu0 0.0
  %2190 = vmatpush1.msra.mxu0 %v2133
  %2191 = vmatprep.subr.mxu0 0.0
  %2192 = vmatpush1.msra.mxu0 %v2132
  %2193 = vmatprep.subr.mxu0 0.0
  %2194 = vmatpush1.msra.mxu0 %v2131
  %2195 = vmatprep.subr.mxu0 0.0
  %2196 = vmatpush1.msra.mxu0 %v2130
  %2197 = vmatprep.subr.mxu0 0.0
  %2198 = vmatpush2.msra.mxu0 0.0
  %2199 = vmatprep.subr.mxu0 0.0
  %2200 = vmatpush2.msra.mxu0 0.0
  %2201 = vmatprep.subr.mxu0 0.0
  %2202 = vmatpush2.msra.mxu0 0.0
  %2203 = vmatprep.subr.mxu0 0.0
  %2204 = vmatpush2.msra.mxu0 0.0
  %2205 = vmatprep.subr.mxu0 0.0
  %2206 = vmatpush2.msra.mxu0 0.0
  %2207 = vmatprep.subr.mxu0 0.0
  %2208 = vmatpush2.msra.mxu0 0.0
  %2209 = vmatprep.subr.mxu0 0.0
  %2210 = vmatpush2.msra.mxu0 0.0
  %2211 = vmatprep.subr.mxu0 0.0
  %2212 = vmatpush2.msra.mxu0 0.0
  %2213 = vmatprep.subr.mxu0 0.0
  %2214 = vmatpush2.msra.mxu0 0.0
  %2215 = vmatprep.subr.mxu0 0.0
  %2216 = vmatpush2.msra.mxu0 0.0
  %2217 = vmatprep.subr.mxu0 0.0
  %2218 = vmatpush2.msra.mxu0 0.0
  %2219 = vmatprep.subr.mxu0 0.0
  %2220 = vmatpush2.msra.mxu0 0.0
  %2221 = vmatprep.subr.mxu0 0.0
  %2222 = vmatpush2.msra.mxu0 0.0
  %2223 = vmatprep.subr.mxu0 0.0
  %2224 = vmatpush2.msra.mxu0 0.0
  %2225 = vmatprep.subr.mxu0 0.0
  %2226 = vmatpush2.msra.mxu0 0.0
  %2227 = vmatprep.subr.mxu0 0.0
  %2228 = vmatpush2.msra.mxu0 0.0
  %2229 = vmatprep.mubr.f32.mxu0 0.0
  %2230 = vmatmul.mubr.f32.gmra.mxu0 %v2142
  %v2231 = vpop.f32.mrf.mxu0
  %v2232 = vadd.f32 %v2139, %v2231
  %v2233 = vpop.f32.mrf.mxu0
  %2234 = vmatprep.mubr.f32.mxu0 0.0
  %2235 = vmatmul.mubr.f32.gmra.mxu0 %v2145
  %v2236 = vpop.f32.mrf.mxu0
  %v2237 = vadd.f32 %v2139, %v2236
  %v2238 = vpop.f32.mrf.mxu0
  %2239 = vmatprep.mubr.f32.mxu0 0.0
  %2240 = vmatmul.mubr.f32.gmra.mxu0 %v2148
  %v2241 = vpop.f32.mrf.mxu0
  %v2242 = vadd.f32 %v2139, %v2241
  %v2243 = vpop.f32.mrf.mxu0
  %2244 = vmatprep.mubr.f32.mxu0 0.0
  %2245 = vmatmul.mubr.f32.gmra.mxu0 %v2151
  %v2246 = vpop.f32.mrf.mxu0
  %v2247 = vadd.f32 %v2139, %v2246
  %v2248 = vpop.f32.mrf.mxu0
  %2249 = vmatprep.mubr.f32.mxu0 0.0
  %2250 = vmatmul.mubr.f32.gmra.mxu0 %v2154
  %v2251 = vpop.f32.mrf.mxu0
  %v2252 = vadd.f32 %v2139, %v2251
  %v2253 = vpop.f32.mrf.mxu0
  %2254 = vmatprep.mubr.f32.mxu0 0.0
  %2255 = vmatmul.mubr.f32.gmra.mxu0 %v2157
  %v2256 = vpop.f32.mrf.mxu0
  %v2257 = vadd.f32 %v2139, %v2256
  %v2258 = vpop.f32.mrf.mxu0
  %2259 = vmatprep.mubr.f32.mxu0 0.0
  %2260 = vmatmul.mubr.f32.gmra.mxu0 %v2160
  %v2261 = vpop.f32.mrf.mxu0
  %v2262 = vadd.f32 %v2139, %v2261
  %v2263 = vpop.f32.mrf.mxu0
  %2264 = vmatprep.mubr.f32.mxu0 0.0
  %2265 = vmatmul.mubr.f32.gmra.mxu0 %v2163
  %v2266 = vpop.f32.mrf.mxu0
  %v2267 = vadd.f32 %v2139, %v2266
  %v2268 = vpop.f32.mrf.mxu0
  %2269 = vdwg.mxu0
  %2270 = vst [vmem:[%s8] sm:$0xff] %v2232
  %2271 = vst [vmem:[%s8 + $0x8] sm:$0xff] %v2237
  %2272 = vst [vmem:[%s8 + $0x10] sm:$0xff] %v2242
  %2273 = vst [vmem:[%s8 + $0x18] sm:$0xff] %v2247
  %2274 = vst [vmem:[%s8 + $0x20] sm:$0xff] %v2252
  %2275 = vst [vmem:[%s8 + $0x28] sm:$0xff] %v2257
  %2276 = vst [vmem:[%s8 + $0x30] sm:$0xff] %v2262
  %2277 = vst [vmem:[%s8 + $0x38] sm:$0xff] %v2267
  // Predicated region
  $region34: #{deepar_forward.1} parent=0 // pred_check
    _
  $region35: #{deepar_forward.1} parent=0 // pred_check_branch
    %2279 = sbr.rel (0) target = $region37
  $region36: #{deepar_forward.1} parent=0 // pred_region
    _
  $region37: #{deepar_forward.1} parent=0 // pred_fallthru
    _
  // Predicated region
  $region38: #{deepar_forward.1} parent=0 // pred_check
    _
  $region39: #{deepar_forward.1} parent=0 // pred_check_branch
    %2281 = sbr.rel (0) target = $region41
  $region40: #{deepar_forward.1} parent=0 // pred_region
    _
  $region41: #{deepar_forward.1} parent=0 // pred_fallthru
    _
  // Predicated region
  $region42: #{deepar_forward.1} parent=0 // pred_check
    _
  $region43: #{deepar_forward.1} parent=0 // pred_check_branch
    %2283 = sbr.rel (0) target = $region45
  $region44: #{deepar_forward.1} parent=0 // pred_region
    _
  $region45: #{deepar_forward.1} parent=0 // pred_fallthru
    _
  // Predicated region
  $region46: #{deepar_forward.1} parent=0 // pred_check
    _
  $region47: #{deepar_forward.1} parent=0 // pred_check_branch
    %2285 = sbr.rel (0) target = $region49
  $region48: #{deepar_forward.1} parent=0 // pred_region
    _
  $region49: #{deepar_forward.1} parent=0 // pred_fallthru
    _
  // Predicated region
  $region50: #{deepar_forward.1} parent=0 // pred_check
    _
  $region51: #{deepar_forward.1} parent=0 // pred_check_branch
    %2287 = sbr.rel (0) target = $region53
  $region52: #{deepar_forward.1} parent=0 // pred_region
    _
  $region53: #{deepar_forward.1} parent=0 // pred_fallthru
    _
  // Predicated region
  $region54: #{deepar_forward.1} parent=0 // pred_check
    _
  $region55: #{deepar_forward.1} parent=0 // pred_check_branch
    %2289 = sbr.rel (0) target = $region57
  $region56: #{deepar_forward.1} parent=0 // pred_region
    _
  $region57: #{deepar_forward.1} parent=0 // pred_fallthru
    _

</llo_original>
